<compile_context>
chip_gen: v7x
topology: tpu7x:2x2x1
jax: 0.10.0
libtpu: 0.0.40
codegen_flags: <defaults>
</compile_context>

<pallas_src>
import jax
import jax.numpy as jnp
from jax.experimental import pallas as pl
from jax.experimental.pallas import tpu as pltpu

IN_DIM, HID_DIM, OUT_DIM = 784, 512, 10


def mlp_logsoftmax_kernel(x_ref, w1_ref, b1_ref, w2_ref, b2_ref, o_ref):
    # hidden = relu(x @ W1 + b1): cast the f32 x tile to bf16 in-kernel (hides under
    # MXU slack), bf16 MXU matmul with f32 accumulation, bias/ReLU in f32 on the VPU.
    x_bf16 = x_ref[...].astype(jnp.bfloat16)
    h = jnp.dot(x_bf16, w1_ref[...], preferred_element_type=jnp.float32)
    h = jnp.maximum(h + b1_ref[...], 0.0)

    # logits = h @ W2 + b2 (re-cast hidden to bf16 for the MXU, accumulate in f32).
    logits = jnp.dot(h.astype(jnp.bfloat16), w2_ref[...],
                     preferred_element_type=jnp.float32)
    logits = logits + b2_ref[...]

    # log_softmax along dim=1 (numerically stable shifted form), all f32, row-wise.
    m = jnp.max(logits, axis=1, keepdims=True)
    shifted = logits - m
    lse = jnp.log(jnp.sum(jnp.exp(shifted), axis=1, keepdims=True))
    o_ref[...] = (shifted - lse).astype(o_ref.dtype)


def _round_up(n, m):
    return ((n + m - 1) // m) * m


def _choose_batch_tile(B, block_b):
    # 8-sublane-aligned batch tile, at most block_b rows.
    tb = min(block_b, _round_up(max(B, 1), 8))
    # Once the batch is large enough, keep >= 2 tiles so the "parallel" grid axis can
    # be sharded across both TensorCores on v7x (single oversized tile = 1 idle TC).
    if B >= 256 and pl.cdiv(B, tb) < 2:
        tb = _round_up(pl.cdiv(B, 2), 8)
    return tb


def net2_forward(x, w1, b1, w2, b2, *, block_b=1024):
    """Forward pass of net2.

    x: (B, 784) float32 (or bf16). w1: (784, 512), b1: (1, 512), w2: (512, 10),
    b2: (1, 10) — weights transposed vs. PyTorch's (out, in) nn.Linear layout; pass
    them pre-cast to bf16 to avoid a per-call cast. Returns (B, 10) f32 log-probs.
    """
    B = x.shape[0]
    tb = _choose_batch_tile(B, block_b)
    n_tiles = pl.cdiv(B, tb)

    # Cast weights only if the caller didn't already store them in bf16; biases f32.
    w1_bf16 = w1 if w1.dtype == jnp.bfloat16 else w1.astype(jnp.bfloat16)
    w2_bf16 = w2 if w2.dtype == jnp.bfloat16 else w2.astype(jnp.bfloat16)
    b1_f32 = b1 if b1.dtype == jnp.float32 else b1.astype(jnp.float32)
    b2_f32 = b2 if b2.dtype == jnp.float32 else b2.astype(jnp.float32)

    rows = n_tiles * tb
    cost = pl.CostEstimate(
        flops=2 * rows * (IN_DIM * HID_DIM + HID_DIM * OUT_DIM),
        transcendentals=rows * (OUT_DIM + 1),
        bytes_accessed=(rows * IN_DIM * x.dtype.itemsize
                        + w1_bf16.size * 2 + w2_bf16.size * 2
                        + b1_f32.size * 4 + b2_f32.size * 4
                        + rows * OUT_DIM * 4),
    )

    out = pl.pallas_call(
        mlp_logsoftmax_kernel,
        out_shape=jax.ShapeDtypeStruct((B, OUT_DIM), jnp.float32),
        grid=(n_tiles,),
        in_specs=[
            pl.BlockSpec((tb, IN_DIM), lambda i: (i, 0)),        # x: tiled over batch
            pl.BlockSpec((IN_DIM, HID_DIM), lambda i: (0, 0)),   # W1: resident in VMEM
            pl.BlockSpec((1, HID_DIM), lambda i: (0, 0)),        # b1: resident
            pl.BlockSpec((HID_DIM, OUT_DIM), lambda i: (0, 0)),  # W2: resident
            pl.BlockSpec((1, OUT_DIM), lambda i: (0, 0)),        # b2: resident
        ],
        out_specs=pl.BlockSpec((tb, OUT_DIM), lambda i: (i, 0)),
        compiler_params=pltpu.CompilerParams(
            # Batch tiles are independent -> shard across both TCs on v7x.
            dimension_semantics=("parallel",),
            # Headroom beyond v5e's 16 MiB scoped default for large block_b.
            vmem_limit_bytes=32 * 1024 * 1024,
        ),
        cost_estimate=cost,
    )(x, w1_bf16, b1_f32, w2_bf16, b2_f32)

    return out


def init_params(key):
    # Deterministic init mimicking PyTorch nn.Linear: U(-1/sqrt(fan_in), +1/sqrt(fan_in)).
    k1, k2, k3, k4 = jax.random.split(key, 4)
    bound1 = 1.0 / jnp.sqrt(IN_DIM)
    bound2 = 1.0 / jnp.sqrt(HID_DIM)
    w1 = jax.random.uniform(k1, (IN_DIM, HID_DIM), jnp.float32, -bound1, bound1)
    b1 = jax.random.uniform(k2, (1, HID_DIM), jnp.float32, -bound1, bound1)
    w2 = jax.random.uniform(k3, (HID_DIM, OUT_DIM), jnp.float32, -bound2, bound2)
    b2 = jax.random.uniform(k4, (1, OUT_DIM), jnp.float32, -bound2, bound2)
    return w1, b1, w2, b2


def _reference(x, w1, b1, w2, b2):
    # Same bf16-input / f32-accumulate matmul math as the kernel.
    h = jnp.maximum(
        jnp.dot(x.astype(jnp.bfloat16), w1.astype(jnp.bfloat16),
                preferred_element_type=jnp.float32) + b1.astype(jnp.float32), 0.0)
    logits = jnp.dot(h.astype(jnp.bfloat16), w2.astype(jnp.bfloat16),
                     preferred_element_type=jnp.float32) + b2.astype(jnp.float32)
    return jax.nn.log_softmax(logits, axis=1)


if __name__ == "__main__":
    key = jax.random.PRNGKey(0)
    kx, kx2, kp = jax.random.split(key, 3)

    w1, b1, w2, b2 = init_params(kp)
    # Pre-cast weights to bf16 ONCE (outside the forward) so no per-call cast pass.
    w1_bf16 = w1.astype(jnp.bfloat16)
    w2_bf16 = w2.astype(jnp.bfloat16)

    # Small primary test: batch=4 (single 8-row tile, ragged rows masked on write).
    B = 4
    x = jax.random.normal(kx, (B, IN_DIM), jnp.float32)
    out = jax.block_until_ready(net2_forward(x, w1_bf16, b1, w2_bf16, b2))
    assert out.shape == (B, OUT_DIM)
    ref = _reference(x, w1, b1, w2, b2)
    assert jnp.allclose(out, ref, atol=1e-3, rtol=1e-3), \
        f"max abs err = {jnp.max(jnp.abs(out - ref))}"
    # Loose sanity check against the pure-f32 reference (bf16 rounding only).
    ref32 = jax.nn.log_softmax(jnp.maximum(x @ w1 + b1, 0.0) @ w2 + b2, axis=1)
    assert jnp.allclose(out, ref32, atol=5e-2, rtol=5e-2)

    # Secondary test: exercises multi-tile grid + ragged last block (3 tiles of 128).
    B2 = 300
    x2 = jax.random.normal(kx2, (B2, IN_DIM), jnp.float32)
    out2 = jax.block_until_ready(
        net2_forward(x2, w1_bf16, b1, w2_bf16, b2, block_b=128))
    ref2 = _reference(x2, w1, b1, w2, b2)
    assert out2.shape == (B2, OUT_DIM)
    assert jnp.allclose(out2, ref2, atol=1e-3, rtol=1e-3), \
        f"max abs err = {jnp.max(jnp.abs(out2 - ref2))}"

    print("KERNEL_OK")
</pallas_src>

<mosaic_0001>
module attributes {stable_mosaic.version = 11 : i64} {
  func.func @mlp_logsoftmax_kernel(%arg0: i32, %arg1: memref<8x784xf32, #tpu.memory_space<vmem>>, %arg2: memref<784x512xbf16, #tpu.memory_space<vmem>>, %arg3: memref<1x512xf32, #tpu.memory_space<vmem>>, %arg4: memref<512x10xbf16, #tpu.memory_space<vmem>>, %arg5: memref<1x10xf32, #tpu.memory_space<vmem>>, %arg6: memref<8x10xf32, #tpu.memory_space<vmem>>) attributes {dimension_semantics = [#tpu.dimension_semantics<parallel>], iteration_bounds = array<i64: 1>, scalar_prefetch = 0 : i64, scratch_operands = 0 : i64, tpu.core_type = #tpu.core_type<tc>, window_params = [{transform_indices = @transform_0, window_bounds = array<i64: 8, 784>}, {pipeline_mode = #tpu.pipeline_mode<synchronous>, transform_indices = @transform_1, window_bounds = array<i64: 784, 512>}, {pipeline_mode = #tpu.pipeline_mode<synchronous>, transform_indices = @transform_2, window_bounds = array<i64: 1, 512>}, {pipeline_mode = #tpu.pipeline_mode<synchronous>, transform_indices = @transform_3, window_bounds = array<i64: 512, 10>}, {pipeline_mode = #tpu.pipeline_mode<synchronous>, transform_indices = @transform_4, window_bounds = array<i64: 1, 10>}, {transform_indices = @transform_5, window_bounds = array<i64: 8, 10>}]} {
    %c0 = arith.constant 0 : index
    %c0_0 = arith.constant 0 : index
    %0 = vector.load %arg1[%c0, %c0_0] : memref<8x784xf32, #tpu.memory_space<vmem>>, vector<8x784xf32>
    %1 = arith.truncf %0 : vector<8x784xf32> to vector<8x784xbf16>
    %c0_1 = arith.constant 0 : index
    %c0_2 = arith.constant 0 : index
    %2 = vector.load %arg2[%c0_1, %c0_2] : memref<784x512xbf16, #tpu.memory_space<vmem>>, vector<784x512xbf16>
    %cst = arith.constant dense<0.000000e+00> : vector<8x512xf32>
    %3 = tpu.matmul %1, %2, %cst {dimension_numbers = #tpu.dot_dimension_numbers<[1], [0], [0], [1], [0, 0, 1, 1], [], []>} : vector<8x784xbf16>, vector<784x512xbf16>, vector<8x512xf32> -> vector<8x512xf32>
    %c0_3 = arith.constant 0 : index
    %c0_4 = arith.constant 0 : index
    %4 = vector.load %arg3[%c0_3, %c0_4] : memref<1x512xf32, #tpu.memory_space<vmem>>, vector<1x512xf32>
    %5 = vector.broadcast %4 : vector<1x512xf32> to vector<8x512xf32>
    %6 = arith.addf %3, %5 : vector<8x512xf32>
    %cst_5 = arith.constant 0.000000e+00 : f32
    %7 = vector.broadcast %cst_5 : f32 to vector<8x512xf32>
    %8 = arith.maximumf %6, %7 : vector<8x512xf32>
    %9 = arith.truncf %8 : vector<8x512xf32> to vector<8x512xbf16>
    %c0_6 = arith.constant 0 : index
    %c0_7 = arith.constant 0 : index
    %10 = vector.load %arg4[%c0_6, %c0_7] : memref<512x10xbf16, #tpu.memory_space<vmem>>, vector<512x10xbf16>
    %cst_8 = arith.constant dense<0.000000e+00> : vector<8x10xf32>
    %11 = tpu.matmul %9, %10, %cst_8 {dimension_numbers = #tpu.dot_dimension_numbers<[1], [0], [0], [1], [0, 0, 1, 1], [], []>} : vector<8x512xbf16>, vector<512x10xbf16>, vector<8x10xf32> -> vector<8x10xf32>
    %c0_9 = arith.constant 0 : index
    %c0_10 = arith.constant 0 : index
    %12 = vector.load %arg5[%c0_9, %c0_10] : memref<1x10xf32, #tpu.memory_space<vmem>>, vector<1x10xf32>
    %13 = vector.broadcast %12 : vector<1x10xf32> to vector<8x10xf32>
    %14 = arith.addf %11, %13 : vector<8x10xf32>
    %cst_11 = arith.constant dense<0xFF800000> : vector<8xf32>
    %15 = vector.multi_reduction <maximumf>, %14, %cst_11 [1] : vector<8x10xf32> to vector<8xf32>
    %16 = vector.shape_cast %15 : vector<8xf32> to vector<8x1xf32>
    %17 = vector.broadcast %16 : vector<8x1xf32> to vector<8x10xf32>
    %18 = arith.subf %14, %17 : vector<8x10xf32>
    %19 = math.exp %18 : vector<8x10xf32>
    %cst_12 = arith.constant dense<0.000000e+00> : vector<8xf32>
    %20 = vector.multi_reduction <add>, %19, %cst_12 [1] : vector<8x10xf32> to vector<8xf32>
    %21 = vector.shape_cast %20 : vector<8xf32> to vector<8x1xf32>
    %22 = math.log %21 : vector<8x1xf32>
    %23 = vector.broadcast %22 : vector<8x1xf32> to vector<8x10xf32>
    %24 = arith.subf %18, %23 : vector<8x10xf32>
    %c0_13 = arith.constant 0 : index
    %c0_14 = arith.constant 0 : index
    %25 = vector.load %arg6[%c0_13, %c0_14] : memref<8x10xf32, #tpu.memory_space<vmem>>, vector<8x10xf32>
    tpu.vector_store %arg6[%c0_13, %c0_14], %24 {strides = array<i32>} : memref<8x10xf32, #tpu.memory_space<vmem>>, vector<8x10xf32>,
    return
  }
  func.func @transform_0(%arg0: i32) -> (i32, i32) {
    %c0_i32 = arith.constant 0 : i32
    %c0_i32_0 = arith.constant 0 : i32
    return %arg0, %c0_i32 : i32, i32
  }
  func.func @transform_1(%arg0: i32) -> (i32, i32) {
    %c0_i32 = arith.constant 0 : i32
    %c0_i32_0 = arith.constant 0 : i32
    %c0_i32_1 = arith.constant 0 : i32
    return %c0_i32, %c0_i32_0 : i32, i32
  }
  func.func @transform_2(%arg0: i32) -> (i32, i32) {
    %c0_i32 = arith.constant 0 : i32
    %c0_i32_0 = arith.constant 0 : i32
    %c0_i32_1 = arith.constant 0 : i32
    return %c0_i32, %c0_i32_0 : i32, i32
  }
  func.func @transform_3(%arg0: i32) -> (i32, i32) {
    %c0_i32 = arith.constant 0 : i32
    %c0_i32_0 = arith.constant 0 : i32
    %c0_i32_1 = arith.constant 0 : i32
    return %c0_i32, %c0_i32_0 : i32, i32
  }
  func.func @transform_4(%arg0: i32) -> (i32, i32) {
    %c0_i32 = arith.constant 0 : i32
    %c0_i32_0 = arith.constant 0 : i32
    %c0_i32_1 = arith.constant 0 : i32
    return %c0_i32, %c0_i32_0 : i32, i32
  }
  func.func @transform_5(%arg0: i32) -> (i32, i32) {
    %c0_i32 = arith.constant 0 : i32
    %c0_i32_0 = arith.constant 0 : i32
    return %arg0, %c0_i32 : i32, i32
  }
}

</mosaic_0001>

<llo_original>
// kernel: tpu_custom_call.1
$region0: #{tpu_custom_call.1}
  #allocation0 [shape = 'u32[]', space=smem, size = 0x4, offset = 0x4, fixed_abs, tag = 'smem constant byte address 0x4 - core index']
  #allocation1 [shape = 'u32[144,128]{1,0:T(1,128)}', space=vmem, size = 0x12000, scoped, tag = 'internal scratch']
  %s0 = inlined_call_operand.vmem [shape: f32[4,784], index: 0, kind: input, shape index: {}]
  %s1 = inlined_call_operand.hbm [shape: bf16[784,512], index: 1, kind: input, shape index: {}]
  %s2 = inlined_call_operand.vmem [shape: f32[1,512], index: 2, kind: input, shape index: {}]
  %s3 = inlined_call_operand.vmem [shape: bf16[512,10], index: 3, kind: input, shape index: {}]
  %s4 = inlined_call_operand.vmem [shape: f32[1,10], index: 4, kind: input, shape index: {}]
  %s5 = inlined_call_operand.hbm [shape: f32[4,10], index: 5, kind: output, shape index: {}]
  %s6 = sld [smem:[#allocation0]]
  $region34: #{tpu_custom_call.1} parent=0
    _
  %s8 = ssub.s32 1, %s6
  %s9 = scalar_select 0, %s8, %s6
  $region1: #{tpu_custom_call.1} parent=0
    #allocation2 [shape = 'u8[802816]{0}', space=vmem, size = 0xc4000, scoped, tag = 'input window, operand 1, single buffered']
    #allocation3 [shape = 's32[1]{0}', space=sflag, size = 0x4, scoped, tag = 'scoped memory for tpu_custom_call.1']
    #allocation4 [shape = 's32[1]{0}', space=sflag, size = 0x4, scoped, tag = 'scoped memory for tpu_custom_call.1']
    #allocation5 [shape = 'u8[4096]{0}', space=vmem, size = 0x1000, scoped, tag = 'output window, operand 0, single buffered']
    %10 = vsyncpa [#allocation3], 0
    %11 = vsyncpa [#allocation4], 0
    // Predicated region
    $region2: #{tpu_custom_call.1} parent=1 // pred_check
      _
    $region3: #{tpu_custom_call.1} parent=1 // pred_check_branch
      %13 = sbr.rel (0) target = $region5
    $region4: #{tpu_custom_call.1} parent=1 // pred_region
      _
    $region5: #{tpu_custom_call.1} parent=1 // pred_fallthru
      _
    // Predicated region
    $region6: #{tpu_custom_call.1} parent=1 // pred_check
      _
    $region7: #{tpu_custom_call.1} parent=1 // pred_check_branch
      %15 = sbr.rel (0) target = $region9
    $region8: #{tpu_custom_call.1} parent=1 // pred_region
      %s17 = ssub.s32 25088, 25088
      %18 = vsyncadd [#allocation3], %s17
      %s19 = sshll.u32 [#allocation2], 4
      %s20 = int_to_ptr.vmem [resolvable:$true] %s19
      %25 = dma.hbm_to_vmem [thread:$0]  %s1, 25088, %s20, [#allocation3], 256, 256, 16
    $region9: #{tpu_custom_call.1} parent=1 // pred_fallthru
      _
    // Predicated region
    $region10: #{tpu_custom_call.1} parent=1 // pred_check
      _
    $region11: #{tpu_custom_call.1} parent=1 // pred_check_branch
      %27 = sbr.rel (0) target = $region13
    $region12: #{tpu_custom_call.1} parent=1 // pred_region
      _
    $region13: #{tpu_custom_call.1} parent=1 // pred_fallthru
      _
    // Predicated region
    $region14: #{tpu_custom_call.1} parent=1 // pred_check
      _
    $region15: #{tpu_custom_call.1} parent=1 // pred_check_branch
      %29 = sbr.rel (0) target = $region17
    $region16: #{tpu_custom_call.1} parent=1 // pred_region
      _
    $region17: #{tpu_custom_call.1} parent=1 // pred_fallthru
      _
    // Predicated region
    $region18: #{tpu_custom_call.1} parent=1 // pred_check
      _
    $region19: #{tpu_custom_call.1} parent=1 // pred_check_branch
      %31 = sbr.rel (0) target = $region21
    $region20: #{tpu_custom_call.1} parent=1 // pred_region
      _
    $region21: #{tpu_custom_call.1} parent=1 // pred_fallthru
      _
    // Predicated region
    $region22: #{tpu_custom_call.1} parent=1 // pred_check
      _
    $region23: #{tpu_custom_call.1} parent=1 // pred_check_branch
      %33 = sbr.rel (0) target = $region25
    $region24: #{tpu_custom_call.1} parent=1 // pred_region
      %34 = dma.done [#allocation3], 25088
    $region25: #{tpu_custom_call.1} parent=1 // pred_fallthru
      _
    %v36 = vld [vmem:[%s0] sm:$0xff]
    %v37 = vld [vmem:[%s0 + $0x8] sm:$0xff]
    %v38 = vld [vmem:[%s0 + $0x10] sm:$0xff]
    %v39 = vld [vmem:[%s0 + $0x18] sm:$0xf]
    %v40 = vld [vmem:[%s0 + $0x1c] sm:$0xff]
    %v41 = vld [vmem:[%s0 + $0x24] sm:$0xff]
    %v42 = vld [vmem:[%s0 + $0x2c] sm:$0xff]
    %v43 = vld [vmem:[%s0 + $0x34] sm:$0xf]
    %v52 = vcombine.low %v36, %v40
    %v53 = vcombine.high %v36, %v40
    %v54 = vcombine.low %v37, %v41
    %v55 = vcombine.high %v37, %v41
    %v56 = vcombine.low %v38, %v42
    %v57 = vcombine.high %v38, %v42
    %v58 = vcombine.low %v39, %v43
    %v66 = vpack.c.bf16 %v52, %v52
    %v67 = vpack.c.bf16 %v53, %v53
    %v68 = vpack.c.bf16 %v54, %v54
    %v69 = vpack.c.bf16 %v55, %v55
    %v70 = vpack.c.bf16 %v56, %v56
    %v71 = vpack.c.bf16 %v57, %v57
    %v72 = vpack.c.bf16 %v58, %v58
    %v73 = vld [vmem:[#allocation2] sm:$0xff]
    %v74 = vld [vmem:[#allocation2 + $0x8] sm:$0xff]
    %v75 = vld [vmem:[#allocation2 + $0x10] sm:$0xff]
    %v76 = vld [vmem:[#allocation2 + $0x18] sm:$0xff]
    %v77 = vld [vmem:[#allocation2 + $0x20] sm:$0xff]
    %v78 = vld [vmem:[#allocation2 + $0x28] sm:$0xff]
    %v79 = vld [vmem:[#allocation2 + $0x30] sm:$0xff]
    %v80 = vld [vmem:[#allocation2 + $0x38] sm:$0xff]
    %v81 = vld [vmem:[#allocation2 + $0x40] sm:$0xff]
    %v82 = vld [vmem:[#allocation2 + $0x48] sm:$0xff]
    %v83 = vld [vmem:[#allocation2 + $0x50] sm:$0xff]
    %v84 = vld [vmem:[#allocation2 + $0x58] sm:$0xff]
    %v85 = vld [vmem:[#allocation2 + $0x60] sm:$0xff]
    %v86 = vld [vmem:[#allocation2 + $0x68] sm:$0xff]
    %v87 = vld [vmem:[#allocation2 + $0x70] sm:$0xff]
    %v88 = vld [vmem:[#allocation2 + $0x78] sm:$0xff]
    %v89 = vld [vmem:[#allocation2 + $0x80] sm:$0xff]
    %v90 = vld [vmem:[#allocation2 + $0x88] sm:$0xff]
    %v91 = vld [vmem:[#allocation2 + $0x90] sm:$0xff]
    %v92 = vld [vmem:[#allocation2 + $0x98] sm:$0xff]
    %v93 = vld [vmem:[#allocation2 + $0xa0] sm:$0xff]
    %v94 = vld [vmem:[#allocation2 + $0xa8] sm:$0xff]
    %v95 = vld [vmem:[#allocation2 + $0xb0] sm:$0xff]
    %v96 = vld [vmem:[#allocation2 + $0xb8] sm:$0xff]
    %v97 = vld [vmem:[#allocation2 + $0xc0] sm:$0xff]
    %v98 = vld [vmem:[#allocation2 + $0xc8] sm:$0xff]
    %v99 = vld [vmem:[#allocation2 + $0xd0] sm:$0xff]
    %v100 = vld [vmem:[#allocation2 + $0xd8] sm:$0xff]
    %v101 = vld [vmem:[#allocation2 + $0xe0] sm:$0xff]
    %v102 = vld [vmem:[#allocation2 + $0xe8] sm:$0xff]
    %v103 = vld [vmem:[#allocation2 + $0xf0] sm:$0xff]
    %v104 = vld [vmem:[#allocation2 + $0xf8] sm:$0xff]
    %v105 = vld [vmem:[#allocation2 + $0x100] sm:$0xff]
    %v106 = vld [vmem:[#allocation2 + $0x108] sm:$0xff]
    %v107 = vld [vmem:[#allocation2 + $0x110] sm:$0xff]
    %v108 = vld [vmem:[#allocation2 + $0x118] sm:$0xff]
    %v109 = vld [vmem:[#allocation2 + $0x120] sm:$0xff]
    %v110 = vld [vmem:[#allocation2 + $0x128] sm:$0xff]
    %v111 = vld [vmem:[#allocation2 + $0x130] sm:$0xff]
    %v112 = vld [vmem:[#allocation2 + $0x138] sm:$0xff]
    %v113 = vld [vmem:[#allocation2 + $0x140] sm:$0xff]
    %v114 = vld [vmem:[#allocation2 + $0x148] sm:$0xff]
    %v115 = vld [vmem:[#allocation2 + $0x150] sm:$0xff]
    %v116 = vld [vmem:[#allocation2 + $0x158] sm:$0xff]
    %v117 = vld [vmem:[#allocation2 + $0x160] sm:$0xff]
    %v118 = vld [vmem:[#allocation2 + $0x168] sm:$0xff]
    %v119 = vld [vmem:[#allocation2 + $0x170] sm:$0xff]
    %v120 = vld [vmem:[#allocation2 + $0x178] sm:$0xff]
    %v121 = vld [vmem:[#allocation2 + $0x180] sm:$0xff]
    %v122 = vld [vmem:[#allocation2 + $0x188] sm:$0xff]
    %v123 = vld [vmem:[#allocation2 + $0x190] sm:$0xff]
    %v124 = vld [vmem:[#allocation2 + $0x198] sm:$0xff]
    %v125 = vld [vmem:[#allocation2 + $0x1a0] sm:$0xff]
    %v126 = vld [vmem:[#allocation2 + $0x1a8] sm:$0xff]
    %v127 = vld [vmem:[#allocation2 + $0x1b0] sm:$0xff]
    %v128 = vld [vmem:[#allocation2 + $0x1b8] sm:$0xff]
    %v129 = vld [vmem:[#allocation2 + $0x1c0] sm:$0xff]
    %v130 = vld [vmem:[#allocation2 + $0x1c8] sm:$0xff]
    %v131 = vld [vmem:[#allocation2 + $0x1d0] sm:$0xff]
    %v132 = vld [vmem:[#allocation2 + $0x1d8] sm:$0xff]
    %v133 = vld [vmem:[#allocation2 + $0x1e0] sm:$0xff]
    %v134 = vld [vmem:[#allocation2 + $0x1e8] sm:$0xff]
    %v135 = vld [vmem:[#allocation2 + $0x1f0] sm:$0xff]
    %v136 = vld [vmem:[#allocation2 + $0x1f8] sm:$0xff]
    %v137 = vld [vmem:[#allocation2 + $0x200] sm:$0xff]
    %v138 = vld [vmem:[#allocation2 + $0x208] sm:$0xff]
    %v139 = vld [vmem:[#allocation2 + $0x210] sm:$0xff]
    %v140 = vld [vmem:[#allocation2 + $0x218] sm:$0xff]
    %v141 = vld [vmem:[#allocation2 + $0x220] sm:$0xff]
    %v142 = vld [vmem:[#allocation2 + $0x228] sm:$0xff]
    %v143 = vld [vmem:[#allocation2 + $0x230] sm:$0xff]
    %v144 = vld [vmem:[#allocation2 + $0x238] sm:$0xff]
    %v145 = vld [vmem:[#allocation2 + $0x240] sm:$0xff]
    %v146 = vld [vmem:[#allocation2 + $0x248] sm:$0xff]
    %v147 = vld [vmem:[#allocation2 + $0x250] sm:$0xff]
    %v148 = vld [vmem:[#allocation2 + $0x258] sm:$0xff]
    %v149 = vld [vmem:[#allocation2 + $0x260] sm:$0xff]
    %v150 = vld [vmem:[#allocation2 + $0x268] sm:$0xff]
    %v151 = vld [vmem:[#allocation2 + $0x270] sm:$0xff]
    %v152 = vld [vmem:[#allocation2 + $0x278] sm:$0xff]
    %v153 = vld [vmem:[#allocation2 + $0x280] sm:$0xff]
    %v154 = vld [vmem:[#allocation2 + $0x288] sm:$0xff]
    %v155 = vld [vmem:[#allocation2 + $0x290] sm:$0xff]
    %v156 = vld [vmem:[#allocation2 + $0x298] sm:$0xff]
    %v157 = vld [vmem:[#allocation2 + $0x2a0] sm:$0xff]
    %v158 = vld [vmem:[#allocation2 + $0x2a8] sm:$0xff]
    %v159 = vld [vmem:[#allocation2 + $0x2b0] sm:$0xff]
    %v160 = vld [vmem:[#allocation2 + $0x2b8] sm:$0xff]
    %v161 = vld [vmem:[#allocation2 + $0x2c0] sm:$0xff]
    %v162 = vld [vmem:[#allocation2 + $0x2c8] sm:$0xff]
    %v163 = vld [vmem:[#allocation2 + $0x2d0] sm:$0xff]
    %v164 = vld [vmem:[#allocation2 + $0x2d8] sm:$0xff]
    %v165 = vld [vmem:[#allocation2 + $0x2e0] sm:$0xff]
    %v166 = vld [vmem:[#allocation2 + $0x2e8] sm:$0xff]
    %v167 = vld [vmem:[#allocation2 + $0x2f0] sm:$0xff]
    %v168 = vld [vmem:[#allocation2 + $0x2f8] sm:$0xff]
    %v169 = vld [vmem:[#allocation2 + $0x300] sm:$0xff]
    %v170 = vld [vmem:[#allocation2 + $0x308] sm:$0xff]
    %v171 = vld [vmem:[#allocation2 + $0x310] sm:$0xff]
    %v172 = vld [vmem:[#allocation2 + $0x318] sm:$0xff]
    %v173 = vld [vmem:[#allocation2 + $0x320] sm:$0xff]
    %v174 = vld [vmem:[#allocation2 + $0x328] sm:$0xff]
    %v175 = vld [vmem:[#allocation2 + $0x330] sm:$0xff]
    %v176 = vld [vmem:[#allocation2 + $0x338] sm:$0xff]
    %v177 = vld [vmem:[#allocation2 + $0x340] sm:$0xff]
    %v178 = vld [vmem:[#allocation2 + $0x348] sm:$0xff]
    %v179 = vld [vmem:[#allocation2 + $0x350] sm:$0xff]
    %v180 = vld [vmem:[#allocation2 + $0x358] sm:$0xff]
    %v181 = vld [vmem:[#allocation2 + $0x360] sm:$0xff]
    %v182 = vld [vmem:[#allocation2 + $0x368] sm:$0xff]
    %v183 = vld [vmem:[#allocation2 + $0x370] sm:$0xff]
    %v184 = vld [vmem:[#allocation2 + $0x378] sm:$0xff]
    %v185 = vld [vmem:[#allocation2 + $0x380] sm:$0xff]
    %v186 = vld [vmem:[#allocation2 + $0x388] sm:$0xff]
    %v187 = vld [vmem:[#allocation2 + $0x390] sm:$0xff]
    %v188 = vld [vmem:[#allocation2 + $0x398] sm:$0xff]
    %v189 = vld [vmem:[#allocation2 + $0x3a0] sm:$0xff]
    %v190 = vld [vmem:[#allocation2 + $0x3a8] sm:$0xff]
    %v191 = vld [vmem:[#allocation2 + $0x3b0] sm:$0xff]
    %v192 = vld [vmem:[#allocation2 + $0x3b8] sm:$0xff]
    %v193 = vld [vmem:[#allocation2 + $0x3c0] sm:$0xff]
    %v194 = vld [vmem:[#allocation2 + $0x3c8] sm:$0xff]
    %v195 = vld [vmem:[#allocation2 + $0x3d0] sm:$0xff]
    %v196 = vld [vmem:[#allocation2 + $0x3d8] sm:$0xff]
    %v197 = vld [vmem:[#allocation2 + $0x3e0] sm:$0xff]
    %v198 = vld [vmem:[#allocation2 + $0x3e8] sm:$0xff]
    %v199 = vld [vmem:[#allocation2 + $0x3f0] sm:$0xff]
    %v200 = vld [vmem:[#allocation2 + $0x3f8] sm:$0xff]
    %v201 = vld [vmem:[#allocation2 + $0x400] sm:$0xff]
    %v202 = vld [vmem:[#allocation2 + $0x408] sm:$0xff]
    %v203 = vld [vmem:[#allocation2 + $0x410] sm:$0xff]
    %v204 = vld [vmem:[#allocation2 + $0x418] sm:$0xff]
    %v205 = vld [vmem:[#allocation2 + $0x420] sm:$0xff]
    %v206 = vld [vmem:[#allocation2 + $0x428] sm:$0xff]
    %v207 = vld [vmem:[#allocation2 + $0x430] sm:$0xff]
    %v208 = vld [vmem:[#allocation2 + $0x438] sm:$0xff]
    %v209 = vld [vmem:[#allocation2 + $0x440] sm:$0xff]
    %v210 = vld [vmem:[#allocation2 + $0x448] sm:$0xff]
    %v211 = vld [vmem:[#allocation2 + $0x450] sm:$0xff]
    %v212 = vld [vmem:[#allocation2 + $0x458] sm:$0xff]
    %v213 = vld [vmem:[#allocation2 + $0x460] sm:$0xff]
    %v214 = vld [vmem:[#allocation2 + $0x468] sm:$0xff]
    %v215 = vld [vmem:[#allocation2 + $0x470] sm:$0xff]
    %v216 = vld [vmem:[#allocation2 + $0x478] sm:$0xff]
    %v217 = vld [vmem:[#allocation2 + $0x480] sm:$0xff]
    %v218 = vld [vmem:[#allocation2 + $0x488] sm:$0xff]
    %v219 = vld [vmem:[#allocation2 + $0x490] sm:$0xff]
    %v220 = vld [vmem:[#allocation2 + $0x498] sm:$0xff]
    %v221 = vld [vmem:[#allocation2 + $0x4a0] sm:$0xff]
    %v222 = vld [vmem:[#allocation2 + $0x4a8] sm:$0xff]
    %v223 = vld [vmem:[#allocation2 + $0x4b0] sm:$0xff]
    %v224 = vld [vmem:[#allocation2 + $0x4b8] sm:$0xff]
    %v225 = vld [vmem:[#allocation2 + $0x4c0] sm:$0xff]
    %v226 = vld [vmem:[#allocation2 + $0x4c8] sm:$0xff]
    %v227 = vld [vmem:[#allocation2 + $0x4d0] sm:$0xff]
    %v228 = vld [vmem:[#allocation2 + $0x4d8] sm:$0xff]
    %v229 = vld [vmem:[#allocation2 + $0x4e0] sm:$0xff]
    %v230 = vld [vmem:[#allocation2 + $0x4e8] sm:$0xff]
    %v231 = vld [vmem:[#allocation2 + $0x4f0] sm:$0xff]
    %v232 = vld [vmem:[#allocation2 + $0x4f8] sm:$0xff]
    %v233 = vld [vmem:[#allocation2 + $0x500] sm:$0xff]
    %v234 = vld [vmem:[#allocation2 + $0x508] sm:$0xff]
    %v235 = vld [vmem:[#allocation2 + $0x510] sm:$0xff]
    %v236 = vld [vmem:[#allocation2 + $0x518] sm:$0xff]
    %v237 = vld [vmem:[#allocation2 + $0x520] sm:$0xff]
    %v238 = vld [vmem:[#allocation2 + $0x528] sm:$0xff]
    %v239 = vld [vmem:[#allocation2 + $0x530] sm:$0xff]
    %v240 = vld [vmem:[#allocation2 + $0x538] sm:$0xff]
    %v241 = vld [vmem:[#allocation2 + $0x540] sm:$0xff]
    %v242 = vld [vmem:[#allocation2 + $0x548] sm:$0xff]
    %v243 = vld [vmem:[#allocation2 + $0x550] sm:$0xff]
    %v244 = vld [vmem:[#allocation2 + $0x558] sm:$0xff]
    %v245 = vld [vmem:[#allocation2 + $0x560] sm:$0xff]
    %v246 = vld [vmem:[#allocation2 + $0x568] sm:$0xff]
    %v247 = vld [vmem:[#allocation2 + $0x570] sm:$0xff]
    %v248 = vld [vmem:[#allocation2 + $0x578] sm:$0xff]
    %v249 = vld [vmem:[#allocation2 + $0x580] sm:$0xff]
    %v250 = vld [vmem:[#allocation2 + $0x588] sm:$0xff]
    %v251 = vld [vmem:[#allocation2 + $0x590] sm:$0xff]
    %v252 = vld [vmem:[#allocation2 + $0x598] sm:$0xff]
    %v253 = vld [vmem:[#allocation2 + $0x5a0] sm:$0xff]
    %v254 = vld [vmem:[#allocation2 + $0x5a8] sm:$0xff]
    %v255 = vld [vmem:[#allocation2 + $0x5b0] sm:$0xff]
    %v256 = vld [vmem:[#allocation2 + $0x5b8] sm:$0xff]
    %v257 = vld [vmem:[#allocation2 + $0x5c0] sm:$0xff]
    %v258 = vld [vmem:[#allocation2 + $0x5c8] sm:$0xff]
    %v259 = vld [vmem:[#allocation2 + $0x5d0] sm:$0xff]
    %v260 = vld [vmem:[#allocation2 + $0x5d8] sm:$0xff]
    %v261 = vld [vmem:[#allocation2 + $0x5e0] sm:$0xff]
    %v262 = vld [vmem:[#allocation2 + $0x5e8] sm:$0xff]
    %v263 = vld [vmem:[#allocation2 + $0x5f0] sm:$0xff]
    %v264 = vld [vmem:[#allocation2 + $0x5f8] sm:$0xff]
    %v265 = vld [vmem:[#allocation2 + $0x600] sm:$0xff]
    %v266 = vld [vmem:[#allocation2 + $0x608] sm:$0xff]
    %v267 = vld [vmem:[#allocation2 + $0x610] sm:$0xff]
    %v268 = vld [vmem:[#allocation2 + $0x618] sm:$0xff]
    %v269 = vld [vmem:[%s2] sm:$0xf]
    %v271 = vlaneseq
    %v272 = vshrl.u32 %v271, 7
    %v273 = vsub.s32 0, %v272
    %v274 = vrot.slane %v269, %v273
    %v275 = vlaneseq
    %v276 = vshrl.u32 %v275, 7
    %v277 = vsub.s32 1, %v276
    %v278 = vrot.slane %v269, %v277
    %v279 = vlaneseq
    %v280 = vshrl.u32 %v279, 7
    %v281 = vsub.s32 2, %v280
    %v282 = vrot.slane %v269, %v281
    %v283 = vlaneseq
    %v284 = vshrl.u32 %v283, 7
    %v285 = vsub.s32 3, %v284
    %v286 = vrot.slane %v269, %v285
    %v487 = vunpack.c.l.b16 %v73
    %v488 = vunpack.c.h.b16 %v73
    %v489 = vunpack.c.l.b16 %v74
    %v490 = vunpack.c.h.b16 %v74
    %v491 = vunpack.c.l.b16 %v75
    %v492 = vunpack.c.h.b16 %v75
    %v493 = vunpack.c.l.b16 %v76
    %v494 = vunpack.c.h.b16 %v76
    %v495 = vunpack.c.l.b16 %v77
    %v496 = vunpack.c.h.b16 %v77
    %v497 = vunpack.c.l.b16 %v78
    %v498 = vunpack.c.h.b16 %v78
    %v499 = vunpack.c.l.b16 %v79
    %v500 = vunpack.c.h.b16 %v79
    %v501 = vunpack.c.l.b16 %v80
    %v502 = vunpack.c.h.b16 %v80
    %v503 = vunpack.c.l.b16 %v81
    %v504 = vunpack.c.h.b16 %v81
    %v505 = vunpack.c.l.b16 %v82
    %v506 = vunpack.c.h.b16 %v82
    %v507 = vunpack.c.l.b16 %v83
    %v508 = vunpack.c.h.b16 %v83
    %v509 = vunpack.c.l.b16 %v84
    %v510 = vunpack.c.h.b16 %v84
    %v511 = vunpack.c.l.b16 %v85
    %v512 = vunpack.c.h.b16 %v85
    %v513 = vunpack.c.l.b16 %v86
    %v514 = vunpack.c.h.b16 %v86
    %v515 = vunpack.c.l.b16 %v87
    %v516 = vunpack.c.h.b16 %v87
    %v517 = vunpack.c.l.b16 %v88
    %v518 = vunpack.c.h.b16 %v88
    %v519 = vunpack.c.l.b16 %v89
    %v520 = vunpack.c.h.b16 %v89
    %v521 = vunpack.c.l.b16 %v90
    %v522 = vunpack.c.h.b16 %v90
    %v523 = vunpack.c.l.b16 %v91
    %v524 = vunpack.c.h.b16 %v91
    %v525 = vunpack.c.l.b16 %v92
    %v526 = vunpack.c.h.b16 %v92
    %v527 = vunpack.c.l.b16 %v93
    %v528 = vunpack.c.h.b16 %v93
    %v529 = vunpack.c.l.b16 %v94
    %v530 = vunpack.c.h.b16 %v94
    %v531 = vunpack.c.l.b16 %v95
    %v532 = vunpack.c.h.b16 %v95
    %v533 = vunpack.c.l.b16 %v96
    %v534 = vunpack.c.h.b16 %v96
    %v535 = vunpack.c.l.b16 %v97
    %v536 = vunpack.c.h.b16 %v97
    %v537 = vunpack.c.l.b16 %v98
    %v538 = vunpack.c.h.b16 %v98
    %v539 = vunpack.c.l.b16 %v99
    %v540 = vunpack.c.h.b16 %v99
    %v541 = vunpack.c.l.b16 %v100
    %v542 = vunpack.c.h.b16 %v100
    %v543 = vunpack.c.l.b16 %v101
    %v544 = vunpack.c.h.b16 %v101
    %v545 = vunpack.c.l.b16 %v102
    %v546 = vunpack.c.h.b16 %v102
    %v547 = vunpack.c.l.b16 %v103
    %v548 = vunpack.c.h.b16 %v103
    %v549 = vunpack.c.l.b16 %v104
    %v550 = vunpack.c.h.b16 %v104
    %v551 = vunpack.c.l.b16 %v105
    %v552 = vunpack.c.h.b16 %v105
    %v553 = vunpack.c.l.b16 %v106
    %v554 = vunpack.c.h.b16 %v106
    %v555 = vunpack.c.l.b16 %v107
    %v556 = vunpack.c.h.b16 %v107
    %v557 = vunpack.c.l.b16 %v108
    %v558 = vunpack.c.h.b16 %v108
    %v559 = vunpack.c.l.b16 %v109
    %v560 = vunpack.c.h.b16 %v109
    %v561 = vunpack.c.l.b16 %v110
    %v562 = vunpack.c.h.b16 %v110
    %v563 = vunpack.c.l.b16 %v111
    %v564 = vunpack.c.h.b16 %v111
    %v565 = vunpack.c.l.b16 %v112
    %v566 = vunpack.c.h.b16 %v112
    %v567 = vunpack.c.l.b16 %v113
    %v568 = vunpack.c.h.b16 %v113
    %v569 = vunpack.c.l.b16 %v114
    %v570 = vunpack.c.h.b16 %v114
    %v571 = vunpack.c.l.b16 %v115
    %v572 = vunpack.c.h.b16 %v115
    %v573 = vunpack.c.l.b16 %v116
    %v574 = vunpack.c.h.b16 %v116
    %v575 = vunpack.c.l.b16 %v117
    %v576 = vunpack.c.h.b16 %v117
    %v577 = vunpack.c.l.b16 %v118
    %v578 = vunpack.c.h.b16 %v118
    %v579 = vunpack.c.l.b16 %v119
    %v580 = vunpack.c.h.b16 %v119
    %v581 = vunpack.c.l.b16 %v120
    %v582 = vunpack.c.h.b16 %v120
    %v583 = vunpack.c.l.b16 %v121
    %v584 = vunpack.c.h.b16 %v121
    %v585 = vunpack.c.l.b16 %v122
    %v586 = vunpack.c.h.b16 %v122
    %v587 = vunpack.c.l.b16 %v123
    %v588 = vunpack.c.h.b16 %v123
    %v589 = vunpack.c.l.b16 %v124
    %v590 = vunpack.c.h.b16 %v124
    %v591 = vunpack.c.l.b16 %v125
    %v592 = vunpack.c.h.b16 %v125
    %v593 = vunpack.c.l.b16 %v126
    %v594 = vunpack.c.h.b16 %v126
    %v595 = vunpack.c.l.b16 %v127
    %v596 = vunpack.c.h.b16 %v127
    %v597 = vunpack.c.l.b16 %v128
    %v598 = vunpack.c.h.b16 %v128
    %v599 = vunpack.c.l.b16 %v129
    %v600 = vunpack.c.h.b16 %v129
    %v601 = vunpack.c.l.b16 %v130
    %v602 = vunpack.c.h.b16 %v130
    %v603 = vunpack.c.l.b16 %v131
    %v604 = vunpack.c.h.b16 %v131
    %v605 = vunpack.c.l.b16 %v132
    %v606 = vunpack.c.h.b16 %v132
    %v607 = vunpack.c.l.b16 %v133
    %v608 = vunpack.c.h.b16 %v133
    %v609 = vunpack.c.l.b16 %v134
    %v610 = vunpack.c.h.b16 %v134
    %v611 = vunpack.c.l.b16 %v135
    %v612 = vunpack.c.h.b16 %v135
    %v613 = vunpack.c.l.b16 %v136
    %v614 = vunpack.c.h.b16 %v136
    %v615 = vunpack.c.l.b16 %v137
    %v616 = vunpack.c.h.b16 %v137
    %v617 = vunpack.c.l.b16 %v138
    %v618 = vunpack.c.h.b16 %v138
    %v619 = vunpack.c.l.b16 %v139
    %v620 = vunpack.c.h.b16 %v139
    %v621 = vunpack.c.l.b16 %v140
    %v622 = vunpack.c.h.b16 %v140
    %v623 = vunpack.c.l.b16 %v141
    %v624 = vunpack.c.h.b16 %v141
    %v625 = vunpack.c.l.b16 %v142
    %v626 = vunpack.c.h.b16 %v142
    %v627 = vunpack.c.l.b16 %v143
    %v628 = vunpack.c.h.b16 %v143
    %v629 = vunpack.c.l.b16 %v144
    %v630 = vunpack.c.h.b16 %v144
    %v631 = vunpack.c.l.b16 %v145
    %v632 = vunpack.c.h.b16 %v145
    %v633 = vunpack.c.l.b16 %v146
    %v634 = vunpack.c.h.b16 %v146
    %v635 = vunpack.c.l.b16 %v147
    %v636 = vunpack.c.h.b16 %v147
    %v637 = vunpack.c.l.b16 %v148
    %v638 = vunpack.c.h.b16 %v148
    %v639 = vunpack.c.l.b16 %v149
    %v640 = vunpack.c.h.b16 %v149
    %v641 = vunpack.c.l.b16 %v150
    %v642 = vunpack.c.h.b16 %v150
    %v643 = vunpack.c.l.b16 %v151
    %v644 = vunpack.c.h.b16 %v151
    %v645 = vunpack.c.l.b16 %v152
    %v646 = vunpack.c.h.b16 %v152
    %v647 = vunpack.c.l.b16 %v153
    %v648 = vunpack.c.h.b16 %v153
    %v649 = vunpack.c.l.b16 %v154
    %v650 = vunpack.c.h.b16 %v154
    %v651 = vunpack.c.l.b16 %v155
    %v652 = vunpack.c.h.b16 %v155
    %v653 = vunpack.c.l.b16 %v156
    %v654 = vunpack.c.h.b16 %v156
    %v655 = vunpack.c.l.b16 %v157
    %v656 = vunpack.c.h.b16 %v157
    %v657 = vunpack.c.l.b16 %v158
    %v658 = vunpack.c.h.b16 %v158
    %v659 = vunpack.c.l.b16 %v159
    %v660 = vunpack.c.h.b16 %v159
    %v661 = vunpack.c.l.b16 %v160
    %v662 = vunpack.c.h.b16 %v160
    %v663 = vunpack.c.l.b16 %v161
    %v664 = vunpack.c.h.b16 %v161
    %v665 = vunpack.c.l.b16 %v162
    %v666 = vunpack.c.h.b16 %v162
    %v667 = vunpack.c.l.b16 %v163
    %v668 = vunpack.c.h.b16 %v163
    %v669 = vunpack.c.l.b16 %v164
    %v670 = vunpack.c.h.b16 %v164
    %v671 = vunpack.c.l.b16 %v165
    %v672 = vunpack.c.h.b16 %v165
    %v673 = vunpack.c.l.b16 %v166
    %v674 = vunpack.c.h.b16 %v166
    %v675 = vunpack.c.l.b16 %v167
    %v676 = vunpack.c.h.b16 %v167
    %v677 = vunpack.c.l.b16 %v168
    %v678 = vunpack.c.h.b16 %v168
    %v679 = vunpack.c.l.b16 %v169
    %v680 = vunpack.c.h.b16 %v169
    %v681 = vunpack.c.l.b16 %v170
    %v682 = vunpack.c.h.b16 %v170
    %v683 = vunpack.c.l.b16 %v171
    %v684 = vunpack.c.h.b16 %v171
    %v685 = vunpack.c.l.b16 %v172
    %v686 = vunpack.c.h.b16 %v172
    %v687 = vunpack.c.l.b16 %v173
    %v688 = vunpack.c.h.b16 %v173
    %v689 = vunpack.c.l.b16 %v174
    %v690 = vunpack.c.h.b16 %v174
    %v691 = vunpack.c.l.b16 %v175
    %v692 = vunpack.c.h.b16 %v175
    %v693 = vunpack.c.l.b16 %v176
    %v694 = vunpack.c.h.b16 %v176
    %v695 = vunpack.c.l.b16 %v177
    %v696 = vunpack.c.h.b16 %v177
    %v697 = vunpack.c.l.b16 %v178
    %v698 = vunpack.c.h.b16 %v178
    %v699 = vunpack.c.l.b16 %v179
    %v700 = vunpack.c.h.b16 %v179
    %v701 = vunpack.c.l.b16 %v180
    %v702 = vunpack.c.h.b16 %v180
    %v703 = vunpack.c.l.b16 %v181
    %v704 = vunpack.c.h.b16 %v181
    %v705 = vunpack.c.l.b16 %v182
    %v706 = vunpack.c.h.b16 %v182
    %v707 = vunpack.c.l.b16 %v183
    %v708 = vunpack.c.h.b16 %v183
    %v709 = vunpack.c.l.b16 %v184
    %v710 = vunpack.c.h.b16 %v184
    %v711 = vunpack.c.l.b16 %v185
    %v712 = vunpack.c.h.b16 %v185
    %v713 = vunpack.c.l.b16 %v186
    %v714 = vunpack.c.h.b16 %v186
    %v715 = vunpack.c.l.b16 %v187
    %v716 = vunpack.c.h.b16 %v187
    %v717 = vunpack.c.l.b16 %v188
    %v718 = vunpack.c.h.b16 %v188
    %v719 = vunpack.c.l.b16 %v189
    %v720 = vunpack.c.h.b16 %v189
    %v721 = vunpack.c.l.b16 %v190
    %v722 = vunpack.c.h.b16 %v190
    %v723 = vunpack.c.l.b16 %v191
    %v724 = vunpack.c.h.b16 %v191
    %v725 = vunpack.c.l.b16 %v192
    %v726 = vunpack.c.h.b16 %v192
    %v727 = vunpack.c.l.b16 %v193
    %v728 = vunpack.c.h.b16 %v193
    %v729 = vunpack.c.l.b16 %v194
    %v730 = vunpack.c.h.b16 %v194
    %v731 = vunpack.c.l.b16 %v195
    %v732 = vunpack.c.h.b16 %v195
    %v733 = vunpack.c.l.b16 %v196
    %v734 = vunpack.c.h.b16 %v196
    %v735 = vunpack.c.l.b16 %v197
    %v736 = vunpack.c.h.b16 %v197
    %v737 = vunpack.c.l.b16 %v198
    %v738 = vunpack.c.h.b16 %v198
    %v739 = vunpack.c.l.b16 %v199
    %v740 = vunpack.c.h.b16 %v199
    %v741 = vunpack.c.l.b16 %v200
    %v742 = vunpack.c.h.b16 %v200
    %v743 = vunpack.c.l.b16 %v201
    %v744 = vunpack.c.h.b16 %v201
    %v745 = vunpack.c.l.b16 %v202
    %v746 = vunpack.c.h.b16 %v202
    %v747 = vunpack.c.l.b16 %v203
    %v748 = vunpack.c.h.b16 %v203
    %v749 = vunpack.c.l.b16 %v204
    %v750 = vunpack.c.h.b16 %v204
    %v751 = vunpack.c.l.b16 %v205
    %v752 = vunpack.c.h.b16 %v205
    %v753 = vunpack.c.l.b16 %v206
    %v754 = vunpack.c.h.b16 %v206
    %v755 = vunpack.c.l.b16 %v207
    %v756 = vunpack.c.h.b16 %v207
    %v757 = vunpack.c.l.b16 %v208
    %v758 = vunpack.c.h.b16 %v208
    %v759 = vunpack.c.l.b16 %v209
    %v760 = vunpack.c.h.b16 %v209
    %v761 = vunpack.c.l.b16 %v210
    %v762 = vunpack.c.h.b16 %v210
    %v763 = vunpack.c.l.b16 %v211
    %v764 = vunpack.c.h.b16 %v211
    %v765 = vunpack.c.l.b16 %v212
    %v766 = vunpack.c.h.b16 %v212
    %v767 = vunpack.c.l.b16 %v213
    %v768 = vunpack.c.h.b16 %v213
    %v769 = vunpack.c.l.b16 %v214
    %v770 = vunpack.c.h.b16 %v214
    %v771 = vunpack.c.l.b16 %v215
    %v772 = vunpack.c.h.b16 %v215
    %v773 = vunpack.c.l.b16 %v216
    %v774 = vunpack.c.h.b16 %v216
    %v775 = vunpack.c.l.b16 %v217
    %v776 = vunpack.c.h.b16 %v217
    %v777 = vunpack.c.l.b16 %v218
    %v778 = vunpack.c.h.b16 %v218
    %v779 = vunpack.c.l.b16 %v219
    %v780 = vunpack.c.h.b16 %v219
    %v781 = vunpack.c.l.b16 %v220
    %v782 = vunpack.c.h.b16 %v220
    %v783 = vunpack.c.l.b16 %v221
    %v784 = vunpack.c.h.b16 %v221
    %v785 = vunpack.c.l.b16 %v222
    %v786 = vunpack.c.h.b16 %v222
    %v787 = vunpack.c.l.b16 %v223
    %v788 = vunpack.c.h.b16 %v223
    %v789 = vunpack.c.l.b16 %v224
    %v790 = vunpack.c.h.b16 %v224
    %v791 = vunpack.c.l.b16 %v225
    %v792 = vunpack.c.h.b16 %v225
    %v793 = vunpack.c.l.b16 %v226
    %v794 = vunpack.c.h.b16 %v226
    %v795 = vunpack.c.l.b16 %v227
    %v796 = vunpack.c.h.b16 %v227
    %v797 = vunpack.c.l.b16 %v228
    %v798 = vunpack.c.h.b16 %v228
    %v799 = vunpack.c.l.b16 %v229
    %v800 = vunpack.c.h.b16 %v229
    %v801 = vunpack.c.l.b16 %v230
    %v802 = vunpack.c.h.b16 %v230
    %v803 = vunpack.c.l.b16 %v231
    %v804 = vunpack.c.h.b16 %v231
    %v805 = vunpack.c.l.b16 %v232
    %v806 = vunpack.c.h.b16 %v232
    %v807 = vunpack.c.l.b16 %v233
    %v808 = vunpack.c.h.b16 %v233
    %v809 = vunpack.c.l.b16 %v234
    %v810 = vunpack.c.h.b16 %v234
    %v811 = vunpack.c.l.b16 %v235
    %v812 = vunpack.c.h.b16 %v235
    %v813 = vunpack.c.l.b16 %v236
    %v814 = vunpack.c.h.b16 %v236
    %v815 = vunpack.c.l.b16 %v237
    %v816 = vunpack.c.h.b16 %v237
    %v817 = vunpack.c.l.b16 %v238
    %v818 = vunpack.c.h.b16 %v238
    %v819 = vunpack.c.l.b16 %v239
    %v820 = vunpack.c.h.b16 %v239
    %v821 = vunpack.c.l.b16 %v240
    %v822 = vunpack.c.h.b16 %v240
    %v823 = vunpack.c.l.b16 %v241
    %v824 = vunpack.c.h.b16 %v241
    %v825 = vunpack.c.l.b16 %v242
    %v826 = vunpack.c.h.b16 %v242
    %v827 = vunpack.c.l.b16 %v243
    %v828 = vunpack.c.h.b16 %v243
    %v829 = vunpack.c.l.b16 %v244
    %v830 = vunpack.c.h.b16 %v244
    %v831 = vunpack.c.l.b16 %v245
    %v832 = vunpack.c.h.b16 %v245
    %v833 = vunpack.c.l.b16 %v246
    %v834 = vunpack.c.h.b16 %v246
    %v835 = vunpack.c.l.b16 %v247
    %v836 = vunpack.c.h.b16 %v247
    %v837 = vunpack.c.l.b16 %v248
    %v838 = vunpack.c.h.b16 %v248
    %v839 = vunpack.c.l.b16 %v249
    %v840 = vunpack.c.h.b16 %v249
    %v841 = vunpack.c.l.b16 %v250
    %v842 = vunpack.c.h.b16 %v250
    %v843 = vunpack.c.l.b16 %v251
    %v844 = vunpack.c.h.b16 %v251
    %v845 = vunpack.c.l.b16 %v252
    %v846 = vunpack.c.h.b16 %v252
    %v847 = vunpack.c.l.b16 %v253
    %v848 = vunpack.c.h.b16 %v253
    %v849 = vunpack.c.l.b16 %v254
    %v850 = vunpack.c.h.b16 %v254
    %v851 = vunpack.c.l.b16 %v255
    %v852 = vunpack.c.h.b16 %v255
    %v853 = vunpack.c.l.b16 %v256
    %v854 = vunpack.c.h.b16 %v256
    %v855 = vunpack.c.l.b16 %v257
    %v856 = vunpack.c.h.b16 %v257
    %v857 = vunpack.c.l.b16 %v258
    %v858 = vunpack.c.h.b16 %v258
    %v859 = vunpack.c.l.b16 %v259
    %v860 = vunpack.c.h.b16 %v259
    %v861 = vunpack.c.l.b16 %v260
    %v862 = vunpack.c.h.b16 %v260
    %v863 = vunpack.c.l.b16 %v261
    %v864 = vunpack.c.h.b16 %v261
    %v865 = vunpack.c.l.b16 %v262
    %v866 = vunpack.c.h.b16 %v262
    %v867 = vunpack.c.l.b16 %v263
    %v868 = vunpack.c.h.b16 %v263
    %v869 = vunpack.c.l.b16 %v264
    %v870 = vunpack.c.h.b16 %v264
    %v871 = vunpack.c.l.b16 %v265
    %v872 = vunpack.c.h.b16 %v265
    %v873 = vunpack.c.l.b16 %v266
    %v874 = vunpack.c.h.b16 %v266
    %v875 = vunpack.c.l.b16 %v267
    %v876 = vunpack.c.h.b16 %v267
    %v877 = vunpack.c.l.b16 %v268
    %v878 = vunpack.c.h.b16 %v268
    %v879 = vpack.c.b16 %v491, %v487
    %v880 = vpack.c.b16 %v492, %v488
    %v881 = vpack.c.b16 %v493, %v489
    %v882 = vpack.c.b16 %v494, %v490
    %v883 = vpack.c.b16 %v499, %v495
    %v884 = vpack.c.b16 %v500, %v496
    %v885 = vpack.c.b16 %v501, %v497
    %v886 = vpack.c.b16 %v502, %v498
    %v887 = vpack.c.b16 %v507, %v503
    %v888 = vpack.c.b16 %v508, %v504
    %v889 = vpack.c.b16 %v509, %v505
    %v890 = vpack.c.b16 %v510, %v506
    %v891 = vpack.c.b16 %v515, %v511
    %v892 = vpack.c.b16 %v516, %v512
    %v893 = vpack.c.b16 %v517, %v513
    %v894 = vpack.c.b16 %v518, %v514
    %v895 = vpack.c.b16 %v523, %v519
    %v896 = vpack.c.b16 %v524, %v520
    %v897 = vpack.c.b16 %v525, %v521
    %v898 = vpack.c.b16 %v526, %v522
    %v899 = vpack.c.b16 %v531, %v527
    %v900 = vpack.c.b16 %v532, %v528
    %v901 = vpack.c.b16 %v533, %v529
    %v902 = vpack.c.b16 %v534, %v530
    %v903 = vpack.c.b16 %v539, %v535
    %v904 = vpack.c.b16 %v540, %v536
    %v905 = vpack.c.b16 %v541, %v537
    %v906 = vpack.c.b16 %v542, %v538
    %v907 = vpack.c.b16 %v547, %v543
    %v908 = vpack.c.b16 %v548, %v544
    %v909 = vpack.c.b16 %v549, %v545
    %v910 = vpack.c.b16 %v550, %v546
    %v911 = vpack.c.b16 %v555, %v551
    %v912 = vpack.c.b16 %v556, %v552
    %v913 = vpack.c.b16 %v557, %v553
    %v914 = vpack.c.b16 %v558, %v554
    %v915 = vpack.c.b16 %v563, %v559
    %v916 = vpack.c.b16 %v564, %v560
    %v917 = vpack.c.b16 %v565, %v561
    %v918 = vpack.c.b16 %v566, %v562
    %v919 = vpack.c.b16 %v571, %v567
    %v920 = vpack.c.b16 %v572, %v568
    %v921 = vpack.c.b16 %v573, %v569
    %v922 = vpack.c.b16 %v574, %v570
    %v923 = vpack.c.b16 %v579, %v575
    %v924 = vpack.c.b16 %v580, %v576
    %v925 = vpack.c.b16 %v581, %v577
    %v926 = vpack.c.b16 %v582, %v578
    %v927 = vpack.c.b16 %v587, %v583
    %v928 = vpack.c.b16 %v588, %v584
    %v929 = vpack.c.b16 %v589, %v585
    %v930 = vpack.c.b16 %v590, %v586
    %v931 = vpack.c.b16 %v595, %v591
    %v932 = vpack.c.b16 %v596, %v592
    %v933 = vpack.c.b16 %v597, %v593
    %v934 = vpack.c.b16 %v598, %v594
    %v935 = vpack.c.b16 %v603, %v599
    %v936 = vpack.c.b16 %v604, %v600
    %v937 = vpack.c.b16 %v605, %v601
    %v938 = vpack.c.b16 %v606, %v602
    %v939 = vpack.c.b16 %v611, %v607
    %v940 = vpack.c.b16 %v612, %v608
    %v941 = vpack.c.b16 %v613, %v609
    %v942 = vpack.c.b16 %v614, %v610
    %v943 = vpack.c.b16 %v619, %v615
    %v944 = vpack.c.b16 %v620, %v616
    %v945 = vpack.c.b16 %v621, %v617
    %v946 = vpack.c.b16 %v622, %v618
    %v947 = vpack.c.b16 %v627, %v623
    %v948 = vpack.c.b16 %v628, %v624
    %v949 = vpack.c.b16 %v629, %v625
    %v950 = vpack.c.b16 %v630, %v626
    %v951 = vpack.c.b16 %v635, %v631
    %v952 = vpack.c.b16 %v636, %v632
    %v953 = vpack.c.b16 %v637, %v633
    %v954 = vpack.c.b16 %v638, %v634
    %v955 = vpack.c.b16 %v643, %v639
    %v956 = vpack.c.b16 %v644, %v640
    %v957 = vpack.c.b16 %v645, %v641
    %v958 = vpack.c.b16 %v646, %v642
    %v959 = vpack.c.b16 %v651, %v647
    %v960 = vpack.c.b16 %v652, %v648
    %v961 = vpack.c.b16 %v653, %v649
    %v962 = vpack.c.b16 %v654, %v650
    %v963 = vpack.c.b16 %v659, %v655
    %v964 = vpack.c.b16 %v660, %v656
    %v965 = vpack.c.b16 %v661, %v657
    %v966 = vpack.c.b16 %v662, %v658
    %v967 = vpack.c.b16 %v667, %v663
    %v968 = vpack.c.b16 %v668, %v664
    %v969 = vpack.c.b16 %v669, %v665
    %v970 = vpack.c.b16 %v670, %v666
    %v971 = vpack.c.b16 %v675, %v671
    %v972 = vpack.c.b16 %v676, %v672
    %v973 = vpack.c.b16 %v677, %v673
    %v974 = vpack.c.b16 %v678, %v674
    %v975 = vpack.c.b16 %v683, %v679
    %v976 = vpack.c.b16 %v684, %v680
    %v977 = vpack.c.b16 %v685, %v681
    %v978 = vpack.c.b16 %v686, %v682
    %v979 = vpack.c.b16 %v691, %v687
    %v980 = vpack.c.b16 %v692, %v688
    %v981 = vpack.c.b16 %v693, %v689
    %v982 = vpack.c.b16 %v694, %v690
    %v983 = vpack.c.b16 %v699, %v695
    %v984 = vpack.c.b16 %v700, %v696
    %v985 = vpack.c.b16 %v701, %v697
    %v986 = vpack.c.b16 %v702, %v698
    %v987 = vpack.c.b16 %v707, %v703
    %v988 = vpack.c.b16 %v708, %v704
    %v989 = vpack.c.b16 %v709, %v705
    %v990 = vpack.c.b16 %v710, %v706
    %v991 = vpack.c.b16 %v715, %v711
    %v992 = vpack.c.b16 %v716, %v712
    %v993 = vpack.c.b16 %v717, %v713
    %v994 = vpack.c.b16 %v718, %v714
    %v995 = vpack.c.b16 %v723, %v719
    %v996 = vpack.c.b16 %v724, %v720
    %v997 = vpack.c.b16 %v725, %v721
    %v998 = vpack.c.b16 %v726, %v722
    %v999 = vpack.c.b16 %v731, %v727
    %v1000 = vpack.c.b16 %v732, %v728
    %v1001 = vpack.c.b16 %v733, %v729
    %v1002 = vpack.c.b16 %v734, %v730
    %v1003 = vpack.c.b16 %v739, %v735
    %v1004 = vpack.c.b16 %v740, %v736
    %v1005 = vpack.c.b16 %v741, %v737
    %v1006 = vpack.c.b16 %v742, %v738
    %v1007 = vpack.c.b16 %v747, %v743
    %v1008 = vpack.c.b16 %v748, %v744
    %v1009 = vpack.c.b16 %v749, %v745
    %v1010 = vpack.c.b16 %v750, %v746
    %v1011 = vpack.c.b16 %v755, %v751
    %v1012 = vpack.c.b16 %v756, %v752
    %v1013 = vpack.c.b16 %v757, %v753
    %v1014 = vpack.c.b16 %v758, %v754
    %v1015 = vpack.c.b16 %v763, %v759
    %v1016 = vpack.c.b16 %v764, %v760
    %v1017 = vpack.c.b16 %v765, %v761
    %v1018 = vpack.c.b16 %v766, %v762
    %v1019 = vpack.c.b16 %v771, %v767
    %v1020 = vpack.c.b16 %v772, %v768
    %v1021 = vpack.c.b16 %v773, %v769
    %v1022 = vpack.c.b16 %v774, %v770
    %v1023 = vpack.c.b16 %v779, %v775
    %v1024 = vpack.c.b16 %v780, %v776
    %v1025 = vpack.c.b16 %v781, %v777
    %v1026 = vpack.c.b16 %v782, %v778
    %v1027 = vpack.c.b16 %v787, %v783
    %v1028 = vpack.c.b16 %v788, %v784
    %v1029 = vpack.c.b16 %v789, %v785
    %v1030 = vpack.c.b16 %v790, %v786
    %v1031 = vpack.c.b16 %v795, %v791
    %v1032 = vpack.c.b16 %v796, %v792
    %v1033 = vpack.c.b16 %v797, %v793
    %v1034 = vpack.c.b16 %v798, %v794
    %v1035 = vpack.c.b16 %v803, %v799
    %v1036 = vpack.c.b16 %v804, %v800
    %v1037 = vpack.c.b16 %v805, %v801
    %v1038 = vpack.c.b16 %v806, %v802
    %v1039 = vpack.c.b16 %v811, %v807
    %v1040 = vpack.c.b16 %v812, %v808
    %v1041 = vpack.c.b16 %v813, %v809
    %v1042 = vpack.c.b16 %v814, %v810
    %v1043 = vpack.c.b16 %v819, %v815
    %v1044 = vpack.c.b16 %v820, %v816
    %v1045 = vpack.c.b16 %v821, %v817
    %v1046 = vpack.c.b16 %v822, %v818
    %v1047 = vpack.c.b16 %v827, %v823
    %v1048 = vpack.c.b16 %v828, %v824
    %v1049 = vpack.c.b16 %v829, %v825
    %v1050 = vpack.c.b16 %v830, %v826
    %v1051 = vpack.c.b16 %v835, %v831
    %v1052 = vpack.c.b16 %v836, %v832
    %v1053 = vpack.c.b16 %v837, %v833
    %v1054 = vpack.c.b16 %v838, %v834
    %v1055 = vpack.c.b16 %v843, %v839
    %v1056 = vpack.c.b16 %v844, %v840
    %v1057 = vpack.c.b16 %v845, %v841
    %v1058 = vpack.c.b16 %v846, %v842
    %v1059 = vpack.c.b16 %v851, %v847
    %v1060 = vpack.c.b16 %v852, %v848
    %v1061 = vpack.c.b16 %v853, %v849
    %v1062 = vpack.c.b16 %v854, %v850
    %v1063 = vpack.c.b16 %v859, %v855
    %v1064 = vpack.c.b16 %v860, %v856
    %v1065 = vpack.c.b16 %v861, %v857
    %v1066 = vpack.c.b16 %v862, %v858
    %v1067 = vpack.c.b16 %v867, %v863
    %v1068 = vpack.c.b16 %v868, %v864
    %v1069 = vpack.c.b16 %v869, %v865
    %v1070 = vpack.c.b16 %v870, %v866
    %v1071 = vpack.c.b16 %v875, %v871
    %v1072 = vpack.c.b16 %v876, %v872
    %v1073 = vpack.c.b16 %v877, %v873
    %v1074 = vpack.c.b16 %v878, %v874
    %vm1271 = vcmask 130048
    %v1273 = vsel %vm1271, %v72, 0
    %1275 = vmatprep.subr.bf16.mxu0 %v880
    %1276 = vmatpush1.bf16.msra.mxu0 %v879
    %1277 = vmatprep.subr.bf16.mxu0 %v884
    %1278 = vmatpush1.bf16.msra.mxu0 %v883
    %1279 = vmatprep.subr.bf16.mxu0 %v888
    %1280 = vmatpush1.bf16.msra.mxu0 %v887
    %1281 = vmatprep.subr.bf16.mxu0 %v892
    %1282 = vmatpush1.bf16.msra.mxu0 %v891
    %1283 = vmatprep.subr.bf16.mxu0 %v896
    %1284 = vmatpush1.bf16.msra.mxu0 %v895
    %1285 = vmatprep.subr.bf16.mxu0 %v900
    %1286 = vmatpush1.bf16.msra.mxu0 %v899
    %1287 = vmatprep.subr.bf16.mxu0 %v904
    %1288 = vmatpush1.bf16.msra.mxu0 %v903
    %1289 = vmatprep.subr.bf16.mxu0 %v908
    %1290 = vmatpush1.bf16.msra.mxu0 %v907
    %1291 = vmatprep.subr.bf16.mxu0 %v912
    %1292 = vmatpush1.bf16.msra.mxu0 %v911
    %1293 = vmatprep.subr.bf16.mxu0 %v916
    %1294 = vmatpush1.bf16.msra.mxu0 %v915
    %1295 = vmatprep.subr.bf16.mxu0 %v920
    %1296 = vmatpush1.bf16.msra.mxu0 %v919
    %1297 = vmatprep.subr.bf16.mxu0 %v924
    %1298 = vmatpush1.bf16.msra.mxu0 %v923
    %1299 = vmatprep.subr.bf16.mxu0 %v928
    %1300 = vmatpush1.bf16.msra.mxu0 %v927
    %1301 = vmatprep.subr.bf16.mxu0 %v932
    %1302 = vmatpush1.bf16.msra.mxu0 %v931
    %1303 = vmatprep.subr.bf16.mxu0 %v936
    %1304 = vmatpush1.bf16.msra.mxu0 %v935
    %1305 = vmatprep.subr.bf16.mxu0 %v940
    %1306 = vmatpush1.bf16.msra.mxu0 %v939
    %1307 = vmatprep.mubr.bf16.mxu0 %v67
    %1308 = vmatmul.mubr.bf16.gmra.mrb[0].mxu0 %v66
    %v1309 = vpop.f32.mrb[0].mxu0
    %v1310 = vadd.f32 %v274, %v1309
    %v1311 = vpop.f32.mrb[0].mxu0
    %v1312 = vadd.f32 %v278, %v1311
    %v1313 = vpop.f32.mrb[0].mxu0
    %v1314 = vpop.f32.mrb[0].mxu0
    %1315 = vdwg.mxu0
    %1316 = vmatprep.subr.bf16.mxu0 %v944
    %1317 = vmatpush1.bf16.msra.mxu0 %v943
    %1318 = vmatprep.subr.bf16.mxu0 %v948
    %1319 = vmatpush1.bf16.msra.mxu0 %v947
    %1320 = vmatprep.subr.bf16.mxu0 %v952
    %1321 = vmatpush1.bf16.msra.mxu0 %v951
    %1322 = vmatprep.subr.bf16.mxu0 %v956
    %1323 = vmatpush1.bf16.msra.mxu0 %v955
    %1324 = vmatprep.subr.bf16.mxu0 %v960
    %1325 = vmatpush1.bf16.msra.mxu0 %v959
    %1326 = vmatprep.subr.bf16.mxu0 %v964
    %1327 = vmatpush1.bf16.msra.mxu0 %v963
    %1328 = vmatprep.subr.bf16.mxu0 %v968
    %1329 = vmatpush1.bf16.msra.mxu0 %v967
    %1330 = vmatprep.subr.bf16.mxu0 %v972
    %1331 = vmatpush1.bf16.msra.mxu0 %v971
    %1332 = vmatprep.subr.bf16.mxu0 %v976
    %1333 = vmatpush1.bf16.msra.mxu0 %v975
    %1334 = vmatprep.subr.bf16.mxu0 %v980
    %1335 = vmatpush1.bf16.msra.mxu0 %v979
    %1336 = vmatprep.subr.bf16.mxu0 %v984
    %1337 = vmatpush1.bf16.msra.mxu0 %v983
    %1338 = vmatprep.subr.bf16.mxu0 %v988
    %1339 = vmatpush1.bf16.msra.mxu0 %v987
    %1340 = vmatprep.subr.bf16.mxu0 %v992
    %1341 = vmatpush1.bf16.msra.mxu0 %v991
    %1342 = vmatprep.subr.bf16.mxu0 %v996
    %1343 = vmatpush1.bf16.msra.mxu0 %v995
    %1344 = vmatprep.subr.bf16.mxu0 %v1000
    %1345 = vmatpush1.bf16.msra.mxu0 %v999
    %1346 = vmatprep.subr.bf16.mxu0 %v1004
    %1347 = vmatpush1.bf16.msra.mxu0 %v1003
    %1348 = vmatprep.mubr.bf16.mxu0 %v69
    %1349 = vmatmul.mubr.bf16.gmra.mrb[0].mxu0 %v68
    %v1350 = vpop.f32.mrb[0].mxu0
    %v1351 = vadd.f32 %v1310, %v1350
    %v1352 = vpop.f32.mrb[0].mxu0
    %v1353 = vadd.f32 %v1312, %v1352
    %v1354 = vpop.f32.mrb[0].mxu0
    %v1355 = vpop.f32.mrb[0].mxu0
    %1356 = vdwg.mxu0
    %1357 = vmatprep.subr.bf16.mxu0 %v1008
    %1358 = vmatpush1.bf16.msra.mxu0 %v1007
    %1359 = vmatprep.subr.bf16.mxu0 %v1012
    %1360 = vmatpush1.bf16.msra.mxu0 %v1011
    %1361 = vmatprep.subr.bf16.mxu0 %v1016
    %1362 = vmatpush1.bf16.msra.mxu0 %v1015
    %1363 = vmatprep.subr.bf16.mxu0 %v1020
    %1364 = vmatpush1.bf16.msra.mxu0 %v1019
    %1365 = vmatprep.subr.bf16.mxu0 %v1024
    %1366 = vmatpush1.bf16.msra.mxu0 %v1023
    %1367 = vmatprep.subr.bf16.mxu0 %v1028
    %1368 = vmatpush1.bf16.msra.mxu0 %v1027
    %1369 = vmatprep.subr.bf16.mxu0 %v1032
    %1370 = vmatpush1.bf16.msra.mxu0 %v1031
    %1371 = vmatprep.subr.bf16.mxu0 %v1036
    %1372 = vmatpush1.bf16.msra.mxu0 %v1035
    %1373 = vmatprep.subr.bf16.mxu0 %v1040
    %1374 = vmatpush1.bf16.msra.mxu0 %v1039
    %1375 = vmatprep.subr.bf16.mxu0 %v1044
    %1376 = vmatpush1.bf16.msra.mxu0 %v1043
    %1377 = vmatprep.subr.bf16.mxu0 %v1048
    %1378 = vmatpush1.bf16.msra.mxu0 %v1047
    %1379 = vmatprep.subr.bf16.mxu0 %v1052
    %1380 = vmatpush1.bf16.msra.mxu0 %v1051
    %1381 = vmatprep.subr.bf16.mxu0 %v1056
    %1382 = vmatpush1.bf16.msra.mxu0 %v1055
    %1383 = vmatprep.subr.bf16.mxu0 %v1060
    %1384 = vmatpush1.bf16.msra.mxu0 %v1059
    %1385 = vmatprep.subr.bf16.mxu0 %v1064
    %1386 = vmatpush1.bf16.msra.mxu0 %v1063
    %1387 = vmatprep.subr.bf16.mxu0 %v1068
    %1388 = vmatpush1.bf16.msra.mxu0 %v1067
    %1389 = vmatprep.mubr.bf16.mxu0 %v71
    %1390 = vmatmul.mubr.bf16.gmra.mrb[0].mxu0 %v70
    %v1391 = vpop.f32.mrb[0].mxu0
    %v1392 = vadd.f32 %v1351, %v1391
    %v1393 = vpop.f32.mrb[0].mxu0
    %v1394 = vadd.f32 %v1353, %v1393
    %v1395 = vpop.f32.mrb[0].mxu0
    %v1396 = vpop.f32.mrb[0].mxu0
    %1397 = vdwg.mxu0
    %1398 = vmatprep.subr.bf16.mxu0 %v1072
    %1399 = vmatpush1.bf16.msra.mxu0 %v1071
    %1400 = vmatprep.subr.bf16.mxu0 0
    %1401 = vmatpush1.bf16.msra.mxu0 0
    %1402 = vmatprep.subr.bf16.mxu0 0
    %1403 = vmatpush1.bf16.msra.mxu0 0
    %1404 = vmatprep.subr.bf16.mxu0 0
    %1405 = vmatpush1.bf16.msra.mxu0 0
    %1406 = vmatprep.subr.bf16.mxu0 0
    %1407 = vmatpush1.bf16.msra.mxu0 0
    %1408 = vmatprep.subr.bf16.mxu0 0
    %1409 = vmatpush1.bf16.msra.mxu0 0
    %1410 = vmatprep.subr.bf16.mxu0 0
    %1411 = vmatpush1.bf16.msra.mxu0 0
    %1412 = vmatprep.subr.bf16.mxu0 0
    %1413 = vmatpush1.bf16.msra.mxu0 0
    %1414 = vmatprep.subr.bf16.mxu0 0
    %1415 = vmatpush1.bf16.msra.mxu0 0
    %1416 = vmatprep.subr.bf16.mxu0 0
    %1417 = vmatpush1.bf16.msra.mxu0 0
    %1418 = vmatprep.subr.bf16.mxu0 0
    %1419 = vmatpush1.bf16.msra.mxu0 0
    %1420 = vmatprep.subr.bf16.mxu0 0
    %1421 = vmatpush1.bf16.msra.mxu0 0
    %1422 = vmatprep.subr.bf16.mxu0 0
    %1423 = vmatpush1.bf16.msra.mxu0 0
    %1424 = vmatprep.subr.bf16.mxu0 0
    %1425 = vmatpush1.bf16.msra.mxu0 0
    %1426 = vmatprep.subr.bf16.mxu0 0
    %1427 = vmatpush1.bf16.msra.mxu0 0
    %1428 = vmatprep.subr.bf16.mxu0 0
    %1429 = vmatpush1.bf16.msra.mxu0 0
    %1430 = vmatprep.mubr.bf16.mxu0 0
    %1431 = vmatmul.mubr.bf16.gmra.mrb[0].mxu0 %v1273
    %v1432 = vpop.f32.mrb[0].mxu0
    %v1433 = vadd.f32 %v1392, %v1432
    %v1434 = vpop.f32.mrb[0].mxu0
    %v1435 = vadd.f32 %v1394, %v1434
    %v1436 = vpop.f32.mrb[0].mxu0
    %v1437 = vpop.f32.mrb[0].mxu0
    %1438 = vdwg.mxu0
    %1439 = vmatprep.subr.bf16.mxu0 %v882
    %1440 = vmatpush1.bf16.msra.mxu0 %v881
    %1441 = vmatprep.subr.bf16.mxu0 %v886
    %1442 = vmatpush1.bf16.msra.mxu0 %v885
    %1443 = vmatprep.subr.bf16.mxu0 %v890
    %1444 = vmatpush1.bf16.msra.mxu0 %v889
    %1445 = vmatprep.subr.bf16.mxu0 %v894
    %1446 = vmatpush1.bf16.msra.mxu0 %v893
    %1447 = vmatprep.subr.bf16.mxu0 %v898
    %1448 = vmatpush1.bf16.msra.mxu0 %v897
    %1449 = vmatprep.subr.bf16.mxu0 %v902
    %1450 = vmatpush1.bf16.msra.mxu0 %v901
    %1451 = vmatprep.subr.bf16.mxu0 %v906
    %1452 = vmatpush1.bf16.msra.mxu0 %v905
    %1453 = vmatprep.subr.bf16.mxu0 %v910
    %1454 = vmatpush1.bf16.msra.mxu0 %v909
    %1455 = vmatprep.subr.bf16.mxu0 %v914
    %1456 = vmatpush1.bf16.msra.mxu0 %v913
    %1457 = vmatprep.subr.bf16.mxu0 %v918
    %1458 = vmatpush1.bf16.msra.mxu0 %v917
    %1459 = vmatprep.subr.bf16.mxu0 %v922
    %1460 = vmatpush1.bf16.msra.mxu0 %v921
    %1461 = vmatprep.subr.bf16.mxu0 %v926
    %1462 = vmatpush1.bf16.msra.mxu0 %v925
    %1463 = vmatprep.subr.bf16.mxu0 %v930
    %1464 = vmatpush1.bf16.msra.mxu0 %v929
    %1465 = vmatprep.subr.bf16.mxu0 %v934
    %1466 = vmatpush1.bf16.msra.mxu0 %v933
    %1467 = vmatprep.subr.bf16.mxu0 %v938
    %1468 = vmatpush1.bf16.msra.mxu0 %v937
    %1469 = vmatprep.subr.bf16.mxu0 %v942
    %1470 = vmatpush1.bf16.msra.mxu0 %v941
    %1471 = vmatprep.mubr.bf16.mxu0 %v67
    %1472 = vmatmul.mubr.bf16.gmra.mrb[0].mxu0 %v66
    %v1473 = vpop.f32.mrb[0].mxu0
    %v1474 = vadd.f32 %v282, %v1473
    %v1475 = vpop.f32.mrb[0].mxu0
    %v1476 = vadd.f32 %v286, %v1475
    %v1477 = vpop.f32.mrb[0].mxu0
    %v1478 = vpop.f32.mrb[0].mxu0
    %1479 = vdwg.mxu0
    %1480 = vmatprep.subr.bf16.mxu0 %v946
    %1481 = vmatpush1.bf16.msra.mxu0 %v945
    %1482 = vmatprep.subr.bf16.mxu0 %v950
    %1483 = vmatpush1.bf16.msra.mxu0 %v949
    %1484 = vmatprep.subr.bf16.mxu0 %v954
    %1485 = vmatpush1.bf16.msra.mxu0 %v953
    %1486 = vmatprep.subr.bf16.mxu0 %v958
    %1487 = vmatpush1.bf16.msra.mxu0 %v957
    %1488 = vmatprep.subr.bf16.mxu0 %v962
    %1489 = vmatpush1.bf16.msra.mxu0 %v961
    %1490 = vmatprep.subr.bf16.mxu0 %v966
    %1491 = vmatpush1.bf16.msra.mxu0 %v965
    %1492 = vmatprep.subr.bf16.mxu0 %v970
    %1493 = vmatpush1.bf16.msra.mxu0 %v969
    %1494 = vmatprep.subr.bf16.mxu0 %v974
    %1495 = vmatpush1.bf16.msra.mxu0 %v973
    %1496 = vmatprep.subr.bf16.mxu0 %v978
    %1497 = vmatpush1.bf16.msra.mxu0 %v977
    %1498 = vmatprep.subr.bf16.mxu0 %v982
    %1499 = vmatpush1.bf16.msra.mxu0 %v981
    %1500 = vmatprep.subr.bf16.mxu0 %v986
    %1501 = vmatpush1.bf16.msra.mxu0 %v985
    %1502 = vmatprep.subr.bf16.mxu0 %v990
    %1503 = vmatpush1.bf16.msra.mxu0 %v989
    %1504 = vmatprep.subr.bf16.mxu0 %v994
    %1505 = vmatpush1.bf16.msra.mxu0 %v993
    %1506 = vmatprep.subr.bf16.mxu0 %v998
    %1507 = vmatpush1.bf16.msra.mxu0 %v997
    %1508 = vmatprep.subr.bf16.mxu0 %v1002
    %1509 = vmatpush1.bf16.msra.mxu0 %v1001
    %1510 = vmatprep.subr.bf16.mxu0 %v1006
    %1511 = vmatpush1.bf16.msra.mxu0 %v1005
    %1512 = vmatprep.mubr.bf16.mxu0 %v69
    %1513 = vmatmul.mubr.bf16.gmra.mrb[0].mxu0 %v68
    %v1514 = vpop.f32.mrb[0].mxu0
    %v1515 = vadd.f32 %v1474, %v1514
    %v1516 = vpop.f32.mrb[0].mxu0
    %v1517 = vadd.f32 %v1476, %v1516
    %v1518 = vpop.f32.mrb[0].mxu0
    %v1519 = vpop.f32.mrb[0].mxu0
    %1520 = vdwg.mxu0
    %1521 = vmatprep.subr.bf16.mxu0 %v1010
    %1522 = vmatpush1.bf16.msra.mxu0 %v1009
    %1523 = vmatprep.subr.bf16.mxu0 %v1014
    %1524 = vmatpush1.bf16.msra.mxu0 %v1013
    %1525 = vmatprep.subr.bf16.mxu0 %v1018
    %1526 = vmatpush1.bf16.msra.mxu0 %v1017
    %1527 = vmatprep.subr.bf16.mxu0 %v1022
    %1528 = vmatpush1.bf16.msra.mxu0 %v1021
    %1529 = vmatprep.subr.bf16.mxu0 %v1026
    %1530 = vmatpush1.bf16.msra.mxu0 %v1025
    %1531 = vmatprep.subr.bf16.mxu0 %v1030
    %1532 = vmatpush1.bf16.msra.mxu0 %v1029
    %1533 = vmatprep.subr.bf16.mxu0 %v1034
    %1534 = vmatpush1.bf16.msra.mxu0 %v1033
    %1535 = vmatprep.subr.bf16.mxu0 %v1038
    %1536 = vmatpush1.bf16.msra.mxu0 %v1037
    %1537 = vmatprep.subr.bf16.mxu0 %v1042
    %1538 = vmatpush1.bf16.msra.mxu0 %v1041
    %1539 = vmatprep.subr.bf16.mxu0 %v1046
    %1540 = vmatpush1.bf16.msra.mxu0 %v1045
    %1541 = vmatprep.subr.bf16.mxu0 %v1050
    %1542 = vmatpush1.bf16.msra.mxu0 %v1049
    %1543 = vmatprep.subr.bf16.mxu0 %v1054
    %1544 = vmatpush1.bf16.msra.mxu0 %v1053
    %1545 = vmatprep.subr.bf16.mxu0 %v1058
    %1546 = vmatpush1.bf16.msra.mxu0 %v1057
    %1547 = vmatprep.subr.bf16.mxu0 %v1062
    %1548 = vmatpush1.bf16.msra.mxu0 %v1061
    %1549 = vmatprep.subr.bf16.mxu0 %v1066
    %1550 = vmatpush1.bf16.msra.mxu0 %v1065
    %1551 = vmatprep.subr.bf16.mxu0 %v1070
    %1552 = vmatpush1.bf16.msra.mxu0 %v1069
    %1553 = vmatprep.mubr.bf16.mxu0 %v71
    %1554 = vmatmul.mubr.bf16.gmra.mrb[0].mxu0 %v70
    %v1555 = vpop.f32.mrb[0].mxu0
    %v1556 = vadd.f32 %v1515, %v1555
    %v1557 = vpop.f32.mrb[0].mxu0
    %v1558 = vadd.f32 %v1517, %v1557
    %v1559 = vpop.f32.mrb[0].mxu0
    %v1560 = vpop.f32.mrb[0].mxu0
    %1561 = vdwg.mxu0
    %1562 = vmatprep.subr.bf16.mxu0 %v1074
    %1563 = vmatpush1.bf16.msra.mxu0 %v1073
    %1564 = vmatprep.subr.bf16.mxu0 0
    %1565 = vmatpush1.bf16.msra.mxu0 0
    %1566 = vmatprep.subr.bf16.mxu0 0
    %1567 = vmatpush1.bf16.msra.mxu0 0
    %1568 = vmatprep.subr.bf16.mxu0 0
    %1569 = vmatpush1.bf16.msra.mxu0 0
    %1570 = vmatprep.subr.bf16.mxu0 0
    %1571 = vmatpush1.bf16.msra.mxu0 0
    %1572 = vmatprep.subr.bf16.mxu0 0
    %1573 = vmatpush1.bf16.msra.mxu0 0
    %1574 = vmatprep.subr.bf16.mxu0 0
    %1575 = vmatpush1.bf16.msra.mxu0 0
    %1576 = vmatprep.subr.bf16.mxu0 0
    %1577 = vmatpush1.bf16.msra.mxu0 0
    %1578 = vmatprep.subr.bf16.mxu0 0
    %1579 = vmatpush1.bf16.msra.mxu0 0
    %1580 = vmatprep.subr.bf16.mxu0 0
    %1581 = vmatpush1.bf16.msra.mxu0 0
    %1582 = vmatprep.subr.bf16.mxu0 0
    %1583 = vmatpush1.bf16.msra.mxu0 0
    %1584 = vmatprep.subr.bf16.mxu0 0
    %1585 = vmatpush1.bf16.msra.mxu0 0
    %1586 = vmatprep.subr.bf16.mxu0 0
    %1587 = vmatpush1.bf16.msra.mxu0 0
    %1588 = vmatprep.subr.bf16.mxu0 0
    %1589 = vmatpush1.bf16.msra.mxu0 0
    %1590 = vmatprep.subr.bf16.mxu0 0
    %1591 = vmatpush1.bf16.msra.mxu0 0
    %1592 = vmatprep.subr.bf16.mxu0 0
    %1593 = vmatpush1.bf16.msra.mxu0 0
    %1594 = vmatprep.mubr.bf16.mxu0 0
    %1595 = vmatmul.mubr.bf16.gmra.mrb[0].mxu0 %v1273
    %v1596 = vpop.f32.mrb[0].mxu0
    %v1597 = vadd.f32 %v1556, %v1596
    %v1598 = vpop.f32.mrb[0].mxu0
    %v1599 = vadd.f32 %v1558, %v1598
    %v1600 = vpop.f32.mrb[0].mxu0
    %v1601 = vpop.f32.mrb[0].mxu0
    %1602 = vdwg.mxu0
    %v1603 = vmax.f32 %v1433, 0.0
    %v1604 = vmax.f32 %v1435, 0.0
    %v1605 = vmax.f32 %v1597, 0.0
    %v1606 = vmax.f32 %v1599, 0.0
    %v1607 = vpack.c.bf16 %v1603, %v1603
    %v1608 = vpack.c.bf16 %v1604, %v1604
    %v1609 = vpack.c.bf16 %v1605, %v1605
    %v1610 = vpack.c.bf16 %v1606, %v1606
    %v1611 = vld [vmem:[%s3] sm:$0xf]
    %v1612 = vld [vmem:[%s3 + $0x4] sm:$0xf]
    %v1613 = vld [vmem:[%s3 + $0x8] sm:$0xf]
    %v1614 = vld [vmem:[%s3 + $0xc] sm:$0xf]
    %v1615 = vld [vmem:[%s3 + $0x10] sm:$0xf]
    %v1616 = vld [vmem:[%s3 + $0x14] sm:$0xf]
    %v1617 = vld [vmem:[%s3 + $0x18] sm:$0xf]
    %v1618 = vld [vmem:[%s3 + $0x1c] sm:$0xf]
    %v1619 = vld [vmem:[%s3 + $0x20] sm:$0xf]
    %v1620 = vld [vmem:[%s3 + $0x24] sm:$0xf]
    %v1621 = vld [vmem:[%s3 + $0x28] sm:$0xf]
    %v1622 = vld [vmem:[%s3 + $0x2c] sm:$0xf]
    %v1623 = vld [vmem:[%s3 + $0x30] sm:$0xf]
    %v1624 = vld [vmem:[%s3 + $0x34] sm:$0xf]
    %v1625 = vld [vmem:[%s3 + $0x38] sm:$0xf]
    %v1626 = vld [vmem:[%s3 + $0x3c] sm:$0xf]
    %v1627 = vld [vmem:[%s3 + $0x40] sm:$0xf]
    %v1628 = vld [vmem:[%s3 + $0x44] sm:$0xf]
    %v1629 = vld [vmem:[%s3 + $0x48] sm:$0xf]
    %v1630 = vld [vmem:[%s3 + $0x4c] sm:$0xf]
    %v1631 = vld [vmem:[%s3 + $0x50] sm:$0xf]
    %v1632 = vld [vmem:[%s3 + $0x54] sm:$0xf]
    %v1633 = vld [vmem:[%s3 + $0x58] sm:$0xf]
    %v1634 = vld [vmem:[%s3 + $0x5c] sm:$0xf]
    %v1635 = vld [vmem:[%s3 + $0x60] sm:$0xf]
    %v1636 = vld [vmem:[%s3 + $0x64] sm:$0xf]
    %v1637 = vld [vmem:[%s3 + $0x68] sm:$0xf]
    %v1638 = vld [vmem:[%s3 + $0x6c] sm:$0xf]
    %v1639 = vld [vmem:[%s3 + $0x70] sm:$0xf]
    %v1640 = vld [vmem:[%s3 + $0x74] sm:$0xf]
    %v1641 = vld [vmem:[%s3 + $0x78] sm:$0xf]
    %v1642 = vld [vmem:[%s3 + $0x7c] sm:$0xf]
    %v1643 = vld [vmem:[%s3 + $0x80] sm:$0xf]
    %v1644 = vld [vmem:[%s3 + $0x84] sm:$0xf]
    %v1645 = vld [vmem:[%s3 + $0x88] sm:$0xf]
    %v1646 = vld [vmem:[%s3 + $0x8c] sm:$0xf]
    %v1647 = vld [vmem:[%s3 + $0x90] sm:$0xf]
    %v1648 = vld [vmem:[%s3 + $0x94] sm:$0xf]
    %v1649 = vld [vmem:[%s3 + $0x98] sm:$0xf]
    %v1650 = vld [vmem:[%s3 + $0x9c] sm:$0xf]
    %v1651 = vld [vmem:[%s3 + $0xa0] sm:$0xf]
    %v1652 = vld [vmem:[%s3 + $0xa4] sm:$0xf]
    %v1653 = vld [vmem:[%s3 + $0xa8] sm:$0xf]
    %v1654 = vld [vmem:[%s3 + $0xac] sm:$0xf]
    %v1655 = vld [vmem:[%s3 + $0xb0] sm:$0xf]
    %v1656 = vld [vmem:[%s3 + $0xb4] sm:$0xf]
    %v1657 = vld [vmem:[%s3 + $0xb8] sm:$0xf]
    %v1658 = vld [vmem:[%s3 + $0xbc] sm:$0xf]
    %v1659 = vld [vmem:[%s3 + $0xc0] sm:$0xf]
    %v1660 = vld [vmem:[%s3 + $0xc4] sm:$0xf]
    %v1661 = vld [vmem:[%s3 + $0xc8] sm:$0xf]
    %v1662 = vld [vmem:[%s3 + $0xcc] sm:$0xf]
    %v1663 = vld [vmem:[%s3 + $0xd0] sm:$0xf]
    %v1664 = vld [vmem:[%s3 + $0xd4] sm:$0xf]
    %v1665 = vld [vmem:[%s3 + $0xd8] sm:$0xf]
    %v1666 = vld [vmem:[%s3 + $0xdc] sm:$0xf]
    %v1667 = vld [vmem:[%s3 + $0xe0] sm:$0xf]
    %v1668 = vld [vmem:[%s3 + $0xe4] sm:$0xf]
    %v1669 = vld [vmem:[%s3 + $0xe8] sm:$0xf]
    %v1670 = vld [vmem:[%s3 + $0xec] sm:$0xf]
    %v1671 = vld [vmem:[%s3 + $0xf0] sm:$0xf]
    %v1672 = vld [vmem:[%s3 + $0xf4] sm:$0xf]
    %v1673 = vld [vmem:[%s3 + $0xf8] sm:$0xf]
    %v1674 = vld [vmem:[%s3 + $0xfc] sm:$0xf]
    %v1675 = vld [vmem:[%s4] sm:$0x1]
    %v1677 = vlaneseq
    %v1678 = vshrl.u32 %v1677, 7
    %v1679 = vsub.s32 0, %v1678
    %v1680 = vrot.slane %v1675, %v1679
    %v1746 = vunpack.c.l.b16 %v1611
    %v1747 = vunpack.c.l.b16 %v1612
    %v1748 = vunpack.c.l.b16 %v1613
    %v1749 = vunpack.c.l.b16 %v1614
    %v1750 = vunpack.c.l.b16 %v1615
    %v1751 = vunpack.c.l.b16 %v1616
    %v1752 = vunpack.c.l.b16 %v1617
    %v1753 = vunpack.c.l.b16 %v1618
    %v1754 = vunpack.c.l.b16 %v1619
    %v1755 = vunpack.c.l.b16 %v1620
    %v1756 = vunpack.c.l.b16 %v1621
    %v1757 = vunpack.c.l.b16 %v1622
    %v1758 = vunpack.c.l.b16 %v1623
    %v1759 = vunpack.c.l.b16 %v1624
    %v1760 = vunpack.c.l.b16 %v1625
    %v1761 = vunpack.c.l.b16 %v1626
    %v1762 = vunpack.c.l.b16 %v1627
    %v1763 = vunpack.c.l.b16 %v1628
    %v1764 = vunpack.c.l.b16 %v1629
    %v1765 = vunpack.c.l.b16 %v1630
    %v1766 = vunpack.c.l.b16 %v1631
    %v1767 = vunpack.c.l.b16 %v1632
    %v1768 = vunpack.c.l.b16 %v1633
    %v1769 = vunpack.c.l.b16 %v1634
    %v1770 = vunpack.c.l.b16 %v1635
    %v1771 = vunpack.c.l.b16 %v1636
    %v1772 = vunpack.c.l.b16 %v1637
    %v1773 = vunpack.c.l.b16 %v1638
    %v1774 = vunpack.c.l.b16 %v1639
    %v1775 = vunpack.c.l.b16 %v1640
    %v1776 = vunpack.c.l.b16 %v1641
    %v1777 = vunpack.c.l.b16 %v1642
    %v1778 = vunpack.c.l.b16 %v1643
    %v1779 = vunpack.c.l.b16 %v1644
    %v1780 = vunpack.c.l.b16 %v1645
    %v1781 = vunpack.c.l.b16 %v1646
    %v1782 = vunpack.c.l.b16 %v1647
    %v1783 = vunpack.c.l.b16 %v1648
    %v1784 = vunpack.c.l.b16 %v1649
    %v1785 = vunpack.c.l.b16 %v1650
    %v1786 = vunpack.c.l.b16 %v1651
    %v1787 = vunpack.c.l.b16 %v1652
    %v1788 = vunpack.c.l.b16 %v1653
    %v1789 = vunpack.c.l.b16 %v1654
    %v1790 = vunpack.c.l.b16 %v1655
    %v1791 = vunpack.c.l.b16 %v1656
    %v1792 = vunpack.c.l.b16 %v1657
    %v1793 = vunpack.c.l.b16 %v1658
    %v1794 = vunpack.c.l.b16 %v1659
    %v1795 = vunpack.c.l.b16 %v1660
    %v1796 = vunpack.c.l.b16 %v1661
    %v1797 = vunpack.c.l.b16 %v1662
    %v1798 = vunpack.c.l.b16 %v1663
    %v1799 = vunpack.c.l.b16 %v1664
    %v1800 = vunpack.c.l.b16 %v1665
    %v1801 = vunpack.c.l.b16 %v1666
    %v1802 = vunpack.c.l.b16 %v1667
    %v1803 = vunpack.c.l.b16 %v1668
    %v1804 = vunpack.c.l.b16 %v1669
    %v1805 = vunpack.c.l.b16 %v1670
    %v1806 = vunpack.c.l.b16 %v1671
    %v1807 = vunpack.c.l.b16 %v1672
    %v1808 = vunpack.c.l.b16 %v1673
    %v1809 = vunpack.c.l.b16 %v1674
    %v1810 = vpack.c.b16 %v1747, %v1746
    %v1811 = vpack.c.b16 %v1749, %v1748
    %v1812 = vpack.c.b16 %v1751, %v1750
    %v1813 = vpack.c.b16 %v1753, %v1752
    %v1814 = vpack.c.b16 %v1755, %v1754
    %v1815 = vpack.c.b16 %v1757, %v1756
    %v1816 = vpack.c.b16 %v1759, %v1758
    %v1817 = vpack.c.b16 %v1761, %v1760
    %v1818 = vpack.c.b16 %v1763, %v1762
    %v1819 = vpack.c.b16 %v1765, %v1764
    %v1820 = vpack.c.b16 %v1767, %v1766
    %v1821 = vpack.c.b16 %v1769, %v1768
    %v1822 = vpack.c.b16 %v1771, %v1770
    %v1823 = vpack.c.b16 %v1773, %v1772
    %v1824 = vpack.c.b16 %v1775, %v1774
    %v1825 = vpack.c.b16 %v1777, %v1776
    %v1826 = vpack.c.b16 %v1779, %v1778
    %v1827 = vpack.c.b16 %v1781, %v1780
    %v1828 = vpack.c.b16 %v1783, %v1782
    %v1829 = vpack.c.b16 %v1785, %v1784
    %v1830 = vpack.c.b16 %v1787, %v1786
    %v1831 = vpack.c.b16 %v1789, %v1788
    %v1832 = vpack.c.b16 %v1791, %v1790
    %v1833 = vpack.c.b16 %v1793, %v1792
    %v1834 = vpack.c.b16 %v1795, %v1794
    %v1835 = vpack.c.b16 %v1797, %v1796
    %v1836 = vpack.c.b16 %v1799, %v1798
    %v1837 = vpack.c.b16 %v1801, %v1800
    %v1838 = vpack.c.b16 %v1803, %v1802
    %v1839 = vpack.c.b16 %v1805, %v1804
    %v1840 = vpack.c.b16 %v1807, %v1806
    %v1841 = vpack.c.b16 %v1809, %v1808
    %1874 = vmatprep.subr.bf16.mxu0 0
    %1875 = vmatpush1.bf16.msra.mxu0 %v1810
    %1876 = vmatprep.subr.bf16.mxu0 0
    %1877 = vmatpush1.bf16.msra.mxu0 %v1811
    %1878 = vmatprep.subr.bf16.mxu0 0
    %1879 = vmatpush1.bf16.msra.mxu0 %v1812
    %1880 = vmatprep.subr.bf16.mxu0 0
    %1881 = vmatpush1.bf16.msra.mxu0 %v1813
    %1882 = vmatprep.subr.bf16.mxu0 0
    %1883 = vmatpush1.bf16.msra.mxu0 %v1814
    %1884 = vmatprep.subr.bf16.mxu0 0
    %1885 = vmatpush1.bf16.msra.mxu0 %v1815
    %1886 = vmatprep.subr.bf16.mxu0 0
    %1887 = vmatpush1.bf16.msra.mxu0 %v1816
    %1888 = vmatprep.subr.bf16.mxu0 0
    %1889 = vmatpush1.bf16.msra.mxu0 %v1817
    %1890 = vmatprep.subr.bf16.mxu0 0
    %1891 = vmatpush1.bf16.msra.mxu0 %v1818
    %1892 = vmatprep.subr.bf16.mxu0 0
    %1893 = vmatpush1.bf16.msra.mxu0 %v1819
    %1894 = vmatprep.subr.bf16.mxu0 0
    %1895 = vmatpush1.bf16.msra.mxu0 %v1820
    %1896 = vmatprep.subr.bf16.mxu0 0
    %1897 = vmatpush1.bf16.msra.mxu0 %v1821
    %1898 = vmatprep.subr.bf16.mxu0 0
    %1899 = vmatpush1.bf16.msra.mxu0 %v1822
    %1900 = vmatprep.subr.bf16.mxu0 0
    %1901 = vmatpush1.bf16.msra.mxu0 %v1823
    %1902 = vmatprep.subr.bf16.mxu0 0
    %1903 = vmatpush1.bf16.msra.mxu0 %v1824
    %1904 = vmatprep.subr.bf16.mxu0 0
    %1905 = vmatpush1.bf16.msra.mxu0 %v1825
    %1906 = vmatprep.mubr.bf16.mxu0 %v1608
    %1907 = vmatmul.mubr.bf16.gmra.mrb[0].mxu0 %v1607
    %v1908 = vpop.f32.mrb[0].mxu0
    %v1909 = vadd.f32 %v1680, %v1908
    %v1910 = vpop.f32.mrb[0].mxu0
    %v1911 = vpop.f32.mrb[0].mxu0
    %v1912 = vpop.f32.mrb[0].mxu0
    %1913 = vdwg.mxu0
    %1914 = vmatprep.subr.bf16.mxu0 0
    %1915 = vmatpush1.bf16.msra.mxu0 %v1826
    %1916 = vmatprep.subr.bf16.mxu0 0
    %1917 = vmatpush1.bf16.msra.mxu0 %v1827
    %1918 = vmatprep.subr.bf16.mxu0 0
    %1919 = vmatpush1.bf16.msra.mxu0 %v1828
    %1920 = vmatprep.subr.bf16.mxu0 0
    %1921 = vmatpush1.bf16.msra.mxu0 %v1829
    %1922 = vmatprep.subr.bf16.mxu0 0
    %1923 = vmatpush1.bf16.msra.mxu0 %v1830
    %1924 = vmatprep.subr.bf16.mxu0 0
    %1925 = vmatpush1.bf16.msra.mxu0 %v1831
    %1926 = vmatprep.subr.bf16.mxu0 0
    %1927 = vmatpush1.bf16.msra.mxu0 %v1832
    %1928 = vmatprep.subr.bf16.mxu0 0
    %1929 = vmatpush1.bf16.msra.mxu0 %v1833
    %1930 = vmatprep.subr.bf16.mxu0 0
    %1931 = vmatpush1.bf16.msra.mxu0 %v1834
    %1932 = vmatprep.subr.bf16.mxu0 0
    %1933 = vmatpush1.bf16.msra.mxu0 %v1835
    %1934 = vmatprep.subr.bf16.mxu0 0
    %1935 = vmatpush1.bf16.msra.mxu0 %v1836
    %1936 = vmatprep.subr.bf16.mxu0 0
    %1937 = vmatpush1.bf16.msra.mxu0 %v1837
    %1938 = vmatprep.subr.bf16.mxu0 0
    %1939 = vmatpush1.bf16.msra.mxu0 %v1838
    %1940 = vmatprep.subr.bf16.mxu0 0
    %1941 = vmatpush1.bf16.msra.mxu0 %v1839
    %1942 = vmatprep.subr.bf16.mxu0 0
    %1943 = vmatpush1.bf16.msra.mxu0 %v1840
    %1944 = vmatprep.subr.bf16.mxu0 0
    %1945 = vmatpush1.bf16.msra.mxu0 %v1841
    %1946 = vmatprep.mubr.bf16.mxu0 %v1610
    %1947 = vmatmul.mubr.bf16.gmra.mrb[0].mxu0 %v1609
    %v1948 = vpop.f32.mrb[0].mxu0
    %v1949 = vadd.f32 %v1909, %v1948
    %v1950 = vpop.f32.mrb[0].mxu0
    %v1951 = vpop.f32.mrb[0].mxu0
    %v1952 = vpop.f32.mrb[0].mxu0
    %1953 = vdwg.mxu0
    %vm1954 = vcmask 80896
    %v1955 = vsel %vm1954, %v1949, -inf
    %1956 = vmax.xlane.f32.xlu0 %v1955
    %v1957 = vpop.xlane.xlu0 %1956
    %v1958 = vsub.f32 %v1949, %v1957
    %v1959 = vmul.f32 %v1958, 1.442695
    %v1960 = vpow.pop %v1959
    %v1961 = vsel %vm1954, %v1960, 0.0
    %1962 = vadd.xlane.f32.xlu0 %v1961
    %v1963 = vpop.xlane.xlu0 %1962
    %v1964 = vlog2.pop %v1963
    %v1965 = vmul.f32 %v1964, 0.6931472
    %v1966 = vsub.f32 %v1958, %v1965
    %1967 = vst.msk [vmem:[#allocation5] sm:$0xff] %vm1954, %v1966
    // Predicated region
    $region26: #{tpu_custom_call.1} parent=1 // pred_check
      _
    $region27: #{tpu_custom_call.1} parent=1 // pred_check_branch
      %1969 = sbr.rel (0) target = $region29
    $region28: #{tpu_custom_call.1} parent=1 // pred_region
      %s1971 = ssub.s32 128, 64
      %1972 = vsyncadd [#allocation4], %s1971
      %s1973 = sshll.u32 [#allocation5], 4
      %s1974 = int_to_ptr.vmem [resolvable:$true] %s1973
      %1979 = dma.vmem_to_hbm [thread:$0]  %s1974, 64, %s5, [#allocation4], 64, 64, 4
    $region29: #{tpu_custom_call.1} parent=1 // pred_fallthru
      _
    // Predicated region
    $region30: #{tpu_custom_call.1} parent=1 // pred_check
      _
    $region31: #{tpu_custom_call.1} parent=1 // pred_check_branch
      %1981 = sbr.rel (0) target = $region33
    $region32: #{tpu_custom_call.1} parent=1 // pred_region
      %1982 = dma.done [#allocation4], 128
    $region33: #{tpu_custom_call.1} parent=1 // pred_fallthru
      _
    %1983 = vsyncpa [#allocation3], 1
    %1984 = vsyncpa [#allocation4], 1

</llo_original>
